<compile_context>
chip_gen: v5e
topology: v5e:2x2
jax: 0.10.0
libtpu: 0.0.40
codegen_flags: <defaults>
</compile_context>

<pallas_src>
import numpy as np
import jax
import jax.numpy as jnp
from jax.experimental import pallas as pl
from jax.experimental.pallas import tpu as pltpu


def _make_kernel(S, B, H):
    """Kernel closure with static seq-len / batch / hidden sizes."""
    G = 4 * H  # fused per-direction gate width (=128 for H=32)

    def lstm_step(pre, c):
        # pre: (B, 4H) fused pre-activations, lane chunks [r | f | g | o].
        # Full-width EUP transcendentals; XLU rolls align chunks to lanes [0:H]
        # where c / h live.  Other lanes hold bounded junk (no NaN/Inf possible)
        # that the zero-padded weight rows later multiply away exactly.
        sg = jax.nn.sigmoid(pre)                               # [sr | sf | s(g)| so]
        th = jnp.tanh(pre)                                     # [ .  |  . | tg |  .]
        c_new = (pltpu.roll(sg, shift=3 * H, axis=1) * c            # lanes[0:H]: sf*c
                 + sg * pltpu.roll(th, shift=2 * H, axis=1))         # lanes[0:H]: sr*tg
        h_wide = pltpu.roll(sg, shift=H, axis=1) * jnp.tanh(c_new)   # lanes[0:H]: so*tanh(c)
        return c_new, h_wide

    def kernel(idx_ref,            # SMEM (B, S) int32 token ids (scalar prefetch)
               emb_ref,            # (V, E)   embedding table
               wi_ref,             # (E, 8H)  [Wi_fwd | Wi_bwd], gate order [r,f,g,o]
               whf_ref,            # (4H, 4H) fwd hidden weights, rows [0:H] real, rest 0
               whb_ref,            # (4H, 4H) bwd hidden weights, rows [0:H] real, rest 0
               ball_ref,           # (1, 8H)  merged input+hidden biases, both directions
               wfc_ref,            # (8H, NO) fc weights, rows [0:H] & [4H:5H] real, rest 0
               bfc_ref,            # (1, NO)
               out_ref,            # (S*B, NO) time-major predictions
               x_scr,              # VMEM (S*B, E)   gathered time-major embeddings
               h_scr):             # VMEM (S*B, 8H)  [h_fwd_wide | h_bwd_wide]
        # ---- fused embedding gather (time-major rows) from SMEM token ids -------
        for t in range(S):
            for b in range(B):
                row = t * B + b
                tok = idx_ref[b, t]
                x_scr[row:row + 1, :] = emb_ref[pl.ds(tok, 1), :]
        x = x_scr[...]                                              # (S*B, E)

        wi = wi_ref[...]
        ball = ball_ref[...]
        whf = whf_ref[...]
        whb = whb_ref[...]
        wfc = wfc_ref[...]
        bfc = bfc_ref[...]

        # ---- both directions' input projections: ONE 256-lane MXU pass ----------
        xg = jnp.dot(x, wi, preferred_element_type=jnp.float32) + ball   # (S*B, 8H)
        xg_f = xg[:, :G]          # forward  x-term + bias (vreg-aligned slice)
        xg_b = xg[:, G:]          # backward x-term + bias

        # ---- forward recurrence (fully unrolled; only h @ Wh is serial) ---------
        c = jnp.zeros((B, G), jnp.float32)
        hw = jnp.zeros((B, G), jnp.float32)
        for i in range(S):
            pre = xg_f[i * B:(i + 1) * B, :] + jnp.dot(
                hw, whf, preferred_element_type=jnp.float32)   # zero rows kill junk lanes
            c, hw = lstm_step(pre, c)
            h_scr[i * B:(i + 1) * B, 0:G] = hw

        # ---- "backward" pass: hidden pinned at final forward h ------------------
        # => every gate pre-activation is loop-independent; only c2 recurs.
        hterm = jnp.dot(hw, whb, preferred_element_type=jnp.float32)     # (B, 4H)
        c2 = jnp.zeros((B, G), jnp.float32)
        for k in range(S):
            i = S - 1 - k
            pre = xg_b[i * B:(i + 1) * B, :] + hterm        # per-slice add (no jnp.tile)
            c2, h2w = lstm_step(pre, c2)
            h_scr[i * B:(i + 1) * B, G:2 * G] = h2w

        # ---- fc_output over concat([h_fwd, h_bwd]): one batched matmul, one store
        # TODO(synk): if NO ever grows, pad wfc/out to 128 lanes for an unmasked
        # lane-dense store; at NO=8 the win is negligible.
        out_ref[...] = (jnp.dot(h_scr[...], wfc, preferred_element_type=jnp.float32)
                        + bfc)

    return kernel


def pack_params(params):
    """One-time repack from the natural fused layout (init_params) to the kernel
    layout.  Gate chunk order along the last axis is [r, f, g, o]; the
    input-Linear and hidden-Linear biases of the PyTorch module are merged."""
    H = params["wh_fwd"].shape[0]
    NO = params["w_fc"].shape[1]
    f32 = jnp.float32
    wi_all = jnp.concatenate([params["wi_fwd"], params["wi_bwd"]], axis=1)      # (E, 8H)
    b_all = jnp.concatenate([params["b_fwd"], params["b_bwd"]], axis=1)         # (1, 8H)
    whf_pad = jnp.zeros((4 * H, 4 * H), f32).at[:H, :].set(params["wh_fwd"])
    whb_pad = jnp.zeros((4 * H, 4 * H), f32).at[:H, :].set(params["wh_bwd"])
    wfc_pad = (jnp.zeros((8 * H, NO), f32)
               .at[:H, :].set(params["w_fc"][:H])
               .at[4 * H:5 * H, :].set(params["w_fc"][H:]))
    # TODO(synk): numerics permitting, store wi_all / wh*_pad (and the gathered x)
    # in bf16 for faster MXU passes while keeping gate elementwise math in f32.
    return {
        "embedding": params["embedding"].astype(f32),
        "wi_all": wi_all, "b_all": b_all,
        "whf_pad": whf_pad, "whb_pad": whb_pad,
        "wfc_pad": wfc_pad, "b_fc": params["b_fc"],
    }


def attention_bilstm_additive(input_words, packed):
    """input_words: (batch, seq) int32 -> (seq, batch, n_output) f32."""
    B, S = input_words.shape
    V, E = packed["embedding"].shape
    H = packed["whf_pad"].shape[0] // 4
    NO = packed["wfc_pad"].shape[1]

    grid_spec = pltpu.PrefetchScalarGridSpec(
        num_scalar_prefetch=1,                     # input_words -> SMEM
        grid=(1,),
        in_specs=[pl.BlockSpec(memory_space=pltpu.MemorySpace.VMEM)] * 7,
        out_specs=pl.BlockSpec(memory_space=pltpu.MemorySpace.VMEM),
        scratch_shapes=[pltpu.VMEM((S * B, E), jnp.float32),
                        pltpu.VMEM((S * B, 8 * H), jnp.float32)],
    )
    # TODO(synk): at realistic batch sizes add a parallel batch grid axis
    # (dimension_semantics=("parallel",)) so v7x's second TensorCore is used,
    # and re-derive block sizes for its 64 MiB VMEM; at B=2 one block is right.
    out = pl.pallas_call(
        _make_kernel(S, B, H),
        out_shape=jax.ShapeDtypeStruct((S * B, NO), jnp.float32),
        grid_spec=grid_spec,
        compiler_params=pltpu.CompilerParams(dimension_semantics=("arbitrary",)),
    )(input_words.astype(jnp.int32),
      packed["embedding"], packed["wi_all"],
      packed["whf_pad"], packed["whb_pad"], packed["b_all"],
      packed["wfc_pad"], packed["b_fc"])
    return out.reshape(S, B, NO)


def init_params(key, n_vocab, n_embed, n_hidden, n_output):
    """Deterministic synthetic params in the natural fused layout.

    Gate chunks are laid out along the last axis in order [r, f, g, o], each
    n_hidden wide.  A real PyTorch checkpoint conversion must pack the 8
    per-gate nn.Linear weights in exactly this order and sum the input/hidden
    biases, or results will silently diverge.
    """
    ks = jax.random.split(key, 9)

    def u(k, shape, fan_in):
        bound = 1.0 / float(np.sqrt(fan_in))
        return jax.random.uniform(k, shape, jnp.float32, -bound, bound)

    return {
        "embedding": jax.random.normal(ks[0], (n_vocab, n_embed), jnp.float32) * 0.1,
        "wi_fwd": u(ks[1], (n_embed, 4 * n_hidden), n_embed),
        "wh_fwd": u(ks[2], (n_hidden, 4 * n_hidden), n_hidden),
        "b_fwd":  u(ks[3], (1, 4 * n_hidden), n_hidden),
        "wi_bwd": u(ks[4], (n_embed, 4 * n_hidden), n_embed),
        "wh_bwd": u(ks[5], (n_hidden, 4 * n_hidden), n_hidden),
        "b_bwd":  u(ks[6], (1, 4 * n_hidden), n_hidden),
        "w_fc":   u(ks[7], (2 * n_hidden, n_output), 2 * n_hidden),
        "b_fc":   u(ks[8], (1, n_output), 2 * n_hidden),
    }


def reference_forward(input_words, params):
    """Pure-JAX reference mirroring the PyTorch forward exactly (per-gate math)."""
    emb = jnp.take(params["embedding"], input_words, axis=0)
    x = jnp.transpose(emb, (1, 0, 2)).astype(jnp.float32)
    S, B, _ = x.shape
    H = params["wh_fwd"].shape[0]

    def cell(xt, h, c, wi, wh, b):
        r = jax.nn.sigmoid(xt @ wi[:, 0*H:1*H] + h @ wh[:, 0*H:1*H] + b[:, 0*H:1*H])
        f = jax.nn.sigmoid(xt @ wi[:, 1*H:2*H] + h @ wh[:, 1*H:2*H] + b[:, 1*H:2*H])
        g = jnp.tanh(xt @ wi[:, 2*H:3*H] + h @ wh[:, 2*H:3*H] + b[:, 2*H:3*H])
        o = jax.nn.sigmoid(xt @ wi[:, 3*H:4*H] + h @ wh[:, 3*H:4*H] + b[:, 3*H:4*H])
        c = f * c + r * g
        return o * jnp.tanh(c), c

    h = jnp.zeros((B, H), jnp.float32)
    c = jnp.zeros((B, H), jnp.float32)
    h1 = []
    for i in range(S):
        h, c = cell(x[i], h, c, params["wi_fwd"], params["wh_fwd"], params["b_fwd"])
        h1.append(h)
    h_last = h
    c2 = jnp.zeros((B, H), jnp.float32)
    h2 = [None] * S
    for i in range(S - 1, -1, -1):
        hh, c2 = cell(x[i], h_last, c2, params["wi_bwd"], params["wh_bwd"], params["b_bwd"])
        h2[i] = hh
    cat = jnp.concatenate([jnp.stack(h1), jnp.stack(h2)], axis=-1)   # (S, B, 2H)
    return cat @ params["w_fc"] + params["b_fc"]                     # (S, B, NO)


if __name__ == "__main__":
    n_vocab, n_embed, n_hidden, n_output = 100, 32, 32, 8
    batch, seq = 2, 8

    key = jax.random.PRNGKey(0)
    pkey, dkey = jax.random.split(key)
    params = init_params(pkey, n_vocab, n_embed, n_hidden, n_output)
    packed = pack_params(params)
    input_words = jax.random.randint(dkey, (batch, seq), 0, n_vocab, dtype=jnp.int32)

    out = attention_bilstm_additive(input_words, packed)
    out = jax.block_until_ready(out)
    assert out.shape == (seq, batch, n_output)

    ref = jax.block_until_ready(reference_forward(input_words, params))
    np.testing.assert_allclose(np.asarray(out), np.asarray(ref), rtol=2e-5, atol=2e-5)

    print("KERNEL_OK")
</pallas_src>

<mosaic_0001>
module attributes {stable_mosaic.version = 11 : i64} {
  func.func @kernel(%arg0: i32, %arg1: memref<2x8xi32, #tpu.memory_space<smem>>, %arg2: memref<100x32xf32, #tpu.memory_space<vmem>>, %arg3: memref<32x256xf32, #tpu.memory_space<vmem>>, %arg4: memref<128x128xf32, #tpu.memory_space<vmem>>, %arg5: memref<128x128xf32, #tpu.memory_space<vmem>>, %arg6: memref<1x256xf32, #tpu.memory_space<vmem>>, %arg7: memref<256x8xf32, #tpu.memory_space<vmem>>, %arg8: memref<1x8xf32, #tpu.memory_space<vmem>>, %arg9: memref<16x8xf32, #tpu.memory_space<vmem>>, %arg10: memref<16x32xf32, #tpu.memory_space<vmem>>, %arg11: memref<16x256xf32, #tpu.memory_space<vmem>>) attributes {dimension_semantics = [#tpu.dimension_semantics<arbitrary>], iteration_bounds = array<i64: 1>, scalar_prefetch = 1 : i64, scratch_operands = 2 : i64, tpu.core_type = #tpu.core_type<tc>, window_params = [{pipeline_mode = #tpu.pipeline_mode<synchronous>, transform_indices = @transform_0, window_bounds = array<i64: 100, 32>}, {pipeline_mode = #tpu.pipeline_mode<synchronous>, transform_indices = @transform_1, window_bounds = array<i64: 32, 256>}, {pipeline_mode = #tpu.pipeline_mode<synchronous>, transform_indices = @transform_2, window_bounds = array<i64: 128, 128>}, {pipeline_mode = #tpu.pipeline_mode<synchronous>, transform_indices = @transform_3, window_bounds = array<i64: 128, 128>}, {pipeline_mode = #tpu.pipeline_mode<synchronous>, transform_indices = @transform_4, window_bounds = array<i64: 1, 256>}, {pipeline_mode = #tpu.pipeline_mode<synchronous>, transform_indices = @transform_5, window_bounds = array<i64: 256, 8>}, {pipeline_mode = #tpu.pipeline_mode<synchronous>, transform_indices = @transform_6, window_bounds = array<i64: 1, 8>}, {pipeline_mode = #tpu.pipeline_mode<synchronous>, transform_indices = @transform_7, window_bounds = array<i64: 16, 8>}]} {
    %c0 = arith.constant 0 : index
    %c0_0 = arith.constant 0 : index
    %0 = memref.load %arg1[%c0, %c0_0] : memref<2x8xi32, #tpu.memory_space<smem>>
    %1 = arith.index_cast %0 : i32 to index
    %c0_1 = arith.constant 0 : index
    %2 = vector.load %arg2[%1, %c0_1] : memref<100x32xf32, #tpu.memory_space<vmem>>, vector<1x32xf32>
    %c0_2 = arith.constant 0 : index
    %c0_3 = arith.constant 0 : index
    %3 = vector.load %arg10[%c0_2, %c0_3] : memref<16x32xf32, #tpu.memory_space<vmem>>, vector<1x32xf32>
    tpu.vector_store %arg10[%c0_2, %c0_3], %2 {strides = array<i32>} : memref<16x32xf32, #tpu.memory_space<vmem>>, vector<1x32xf32>,
    %c1 = arith.constant 1 : index
    %c0_4 = arith.constant 0 : index
    %4 = memref.load %arg1[%c1, %c0_4] : memref<2x8xi32, #tpu.memory_space<smem>>
    %5 = arith.index_cast %4 : i32 to index
    %c0_5 = arith.constant 0 : index
    %6 = vector.load %arg2[%5, %c0_5] : memref<100x32xf32, #tpu.memory_space<vmem>>, vector<1x32xf32>
    %c1_6 = arith.constant 1 : index
    %c0_7 = arith.constant 0 : index
    %7 = vector.load %arg10[%c1_6, %c0_7] : memref<16x32xf32, #tpu.memory_space<vmem>>, vector<1x32xf32>
    tpu.vector_store %arg10[%c1_6, %c0_7], %6 {strides = array<i32>} : memref<16x32xf32, #tpu.memory_space<vmem>>, vector<1x32xf32>,
    %c0_8 = arith.constant 0 : index
    %c1_9 = arith.constant 1 : index
    %8 = memref.load %arg1[%c0_8, %c1_9] : memref<2x8xi32, #tpu.memory_space<smem>>
    %9 = arith.index_cast %8 : i32 to index
    %c0_10 = arith.constant 0 : index
    %10 = vector.load %arg2[%9, %c0_10] : memref<100x32xf32, #tpu.memory_space<vmem>>, vector<1x32xf32>
    %c2 = arith.constant 2 : index
    %c0_11 = arith.constant 0 : index
    %11 = vector.load %arg10[%c2, %c0_11] : memref<16x32xf32, #tpu.memory_space<vmem>>, vector<1x32xf32>
    tpu.vector_store %arg10[%c2, %c0_11], %10 {strides = array<i32>} : memref<16x32xf32, #tpu.memory_space<vmem>>, vector<1x32xf32>,
    %c1_12 = arith.constant 1 : index
    %c1_13 = arith.constant 1 : index
    %12 = memref.load %arg1[%c1_12, %c1_13] : memref<2x8xi32, #tpu.memory_space<smem>>
    %13 = arith.index_cast %12 : i32 to index
    %c0_14 = arith.constant 0 : index
    %14 = vector.load %arg2[%13, %c0_14] : memref<100x32xf32, #tpu.memory_space<vmem>>, vector<1x32xf32>
    %c3 = arith.constant 3 : index
    %c0_15 = arith.constant 0 : index
    %15 = vector.load %arg10[%c3, %c0_15] : memref<16x32xf32, #tpu.memory_space<vmem>>, vector<1x32xf32>
    tpu.vector_store %arg10[%c3, %c0_15], %14 {strides = array<i32>} : memref<16x32xf32, #tpu.memory_space<vmem>>, vector<1x32xf32>,
    %c0_16 = arith.constant 0 : index
    %c2_17 = arith.constant 2 : index
    %16 = memref.load %arg1[%c0_16, %c2_17] : memref<2x8xi32, #tpu.memory_space<smem>>
    %17 = arith.index_cast %16 : i32 to index
    %c0_18 = arith.constant 0 : index
    %18 = vector.load %arg2[%17, %c0_18] : memref<100x32xf32, #tpu.memory_space<vmem>>, vector<1x32xf32>
    %c4 = arith.constant 4 : index
    %c0_19 = arith.constant 0 : index
    %19 = vector.load %arg10[%c4, %c0_19] : memref<16x32xf32, #tpu.memory_space<vmem>>, vector<1x32xf32>
    tpu.vector_store %arg10[%c4, %c0_19], %18 {strides = array<i32>} : memref<16x32xf32, #tpu.memory_space<vmem>>, vector<1x32xf32>,
    %c1_20 = arith.constant 1 : index
    %c2_21 = arith.constant 2 : index
    %20 = memref.load %arg1[%c1_20, %c2_21] : memref<2x8xi32, #tpu.memory_space<smem>>
    %21 = arith.index_cast %20 : i32 to index
    %c0_22 = arith.constant 0 : index
    %22 = vector.load %arg2[%21, %c0_22] : memref<100x32xf32, #tpu.memory_space<vmem>>, vector<1x32xf32>
    %c5 = arith.constant 5 : index
    %c0_23 = arith.constant 0 : index
    %23 = vector.load %arg10[%c5, %c0_23] : memref<16x32xf32, #tpu.memory_space<vmem>>, vector<1x32xf32>
    tpu.vector_store %arg10[%c5, %c0_23], %22 {strides = array<i32>} : memref<16x32xf32, #tpu.memory_space<vmem>>, vector<1x32xf32>,
    %c0_24 = arith.constant 0 : index
    %c3_25 = arith.constant 3 : index
    %24 = memref.load %arg1[%c0_24, %c3_25] : memref<2x8xi32, #tpu.memory_space<smem>>
    %25 = arith.index_cast %24 : i32 to index
    %c0_26 = arith.constant 0 : index
    %26 = vector.load %arg2[%25, %c0_26] : memref<100x32xf32, #tpu.memory_space<vmem>>, vector<1x32xf32>
    %c6 = arith.constant 6 : index
    %c0_27 = arith.constant 0 : index
    %27 = vector.load %arg10[%c6, %c0_27] : memref<16x32xf32, #tpu.memory_space<vmem>>, vector<1x32xf32>
    tpu.vector_store %arg10[%c6, %c0_27], %26 {strides = array<i32>} : memref<16x32xf32, #tpu.memory_space<vmem>>, vector<1x32xf32>,
    %c1_28 = arith.constant 1 : index
    %c3_29 = arith.constant 3 : index
    %28 = memref.load %arg1[%c1_28, %c3_29] : memref<2x8xi32, #tpu.memory_space<smem>>
    %29 = arith.index_cast %28 : i32 to index
    %c0_30 = arith.constant 0 : index
    %30 = vector.load %arg2[%29, %c0_30] : memref<100x32xf32, #tpu.memory_space<vmem>>, vector<1x32xf32>
    %c7 = arith.constant 7 : index
    %c0_31 = arith.constant 0 : index
    %31 = vector.load %arg10[%c7, %c0_31] : memref<16x32xf32, #tpu.memory_space<vmem>>, vector<1x32xf32>
    tpu.vector_store %arg10[%c7, %c0_31], %30 {strides = array<i32>} : memref<16x32xf32, #tpu.memory_space<vmem>>, vector<1x32xf32>,
    %c0_32 = arith.constant 0 : index
    %c4_33 = arith.constant 4 : index
    %32 = memref.load %arg1[%c0_32, %c4_33] : memref<2x8xi32, #tpu.memory_space<smem>>
    %33 = arith.index_cast %32 : i32 to index
    %c0_34 = arith.constant 0 : index
    %34 = vector.load %arg2[%33, %c0_34] : memref<100x32xf32, #tpu.memory_space<vmem>>, vector<1x32xf32>
    %c8 = arith.constant 8 : index
    %c0_35 = arith.constant 0 : index
    %35 = vector.load %arg10[%c8, %c0_35] : memref<16x32xf32, #tpu.memory_space<vmem>>, vector<1x32xf32>
    tpu.vector_store %arg10[%c8, %c0_35], %34 {strides = array<i32>} : memref<16x32xf32, #tpu.memory_space<vmem>>, vector<1x32xf32>,
    %c1_36 = arith.constant 1 : index
    %c4_37 = arith.constant 4 : index
    %36 = memref.load %arg1[%c1_36, %c4_37] : memref<2x8xi32, #tpu.memory_space<smem>>
    %37 = arith.index_cast %36 : i32 to index
    %c0_38 = arith.constant 0 : index
    %38 = vector.load %arg2[%37, %c0_38] : memref<100x32xf32, #tpu.memory_space<vmem>>, vector<1x32xf32>
    %c9 = arith.constant 9 : index
    %c0_39 = arith.constant 0 : index
    %39 = vector.load %arg10[%c9, %c0_39] : memref<16x32xf32, #tpu.memory_space<vmem>>, vector<1x32xf32>
    tpu.vector_store %arg10[%c9, %c0_39], %38 {strides = array<i32>} : memref<16x32xf32, #tpu.memory_space<vmem>>, vector<1x32xf32>,
    %c0_40 = arith.constant 0 : index
    %c5_41 = arith.constant 5 : index
    %40 = memref.load %arg1[%c0_40, %c5_41] : memref<2x8xi32, #tpu.memory_space<smem>>
    %41 = arith.index_cast %40 : i32 to index
    %c0_42 = arith.constant 0 : index
    %42 = vector.load %arg2[%41, %c0_42] : memref<100x32xf32, #tpu.memory_space<vmem>>, vector<1x32xf32>
    %c10 = arith.constant 10 : index
    %c0_43 = arith.constant 0 : index
    %43 = vector.load %arg10[%c10, %c0_43] : memref<16x32xf32, #tpu.memory_space<vmem>>, vector<1x32xf32>
    tpu.vector_store %arg10[%c10, %c0_43], %42 {strides = array<i32>} : memref<16x32xf32, #tpu.memory_space<vmem>>, vector<1x32xf32>,
    %c1_44 = arith.constant 1 : index
    %c5_45 = arith.constant 5 : index
    %44 = memref.load %arg1[%c1_44, %c5_45] : memref<2x8xi32, #tpu.memory_space<smem>>
    %45 = arith.index_cast %44 : i32 to index
    %c0_46 = arith.constant 0 : index
    %46 = vector.load %arg2[%45, %c0_46] : memref<100x32xf32, #tpu.memory_space<vmem>>, vector<1x32xf32>
    %c11 = arith.constant 11 : index
    %c0_47 = arith.constant 0 : index
    %47 = vector.load %arg10[%c11, %c0_47] : memref<16x32xf32, #tpu.memory_space<vmem>>, vector<1x32xf32>
    tpu.vector_store %arg10[%c11, %c0_47], %46 {strides = array<i32>} : memref<16x32xf32, #tpu.memory_space<vmem>>, vector<1x32xf32>,
    %c0_48 = arith.constant 0 : index
    %c6_49 = arith.constant 6 : index
    %48 = memref.load %arg1[%c0_48, %c6_49] : memref<2x8xi32, #tpu.memory_space<smem>>
    %49 = arith.index_cast %48 : i32 to index
    %c0_50 = arith.constant 0 : index
    %50 = vector.load %arg2[%49, %c0_50] : memref<100x32xf32, #tpu.memory_space<vmem>>, vector<1x32xf32>
    %c12 = arith.constant 12 : index
    %c0_51 = arith.constant 0 : index
    %51 = vector.load %arg10[%c12, %c0_51] : memref<16x32xf32, #tpu.memory_space<vmem>>, vector<1x32xf32>
    tpu.vector_store %arg10[%c12, %c0_51], %50 {strides = array<i32>} : memref<16x32xf32, #tpu.memory_space<vmem>>, vector<1x32xf32>,
    %c1_52 = arith.constant 1 : index
    %c6_53 = arith.constant 6 : index
    %52 = memref.load %arg1[%c1_52, %c6_53] : memref<2x8xi32, #tpu.memory_space<smem>>
    %53 = arith.index_cast %52 : i32 to index
    %c0_54 = arith.constant 0 : index
    %54 = vector.load %arg2[%53, %c0_54] : memref<100x32xf32, #tpu.memory_space<vmem>>, vector<1x32xf32>
    %c13 = arith.constant 13 : index
    %c0_55 = arith.constant 0 : index
    %55 = vector.load %arg10[%c13, %c0_55] : memref<16x32xf32, #tpu.memory_space<vmem>>, vector<1x32xf32>
    tpu.vector_store %arg10[%c13, %c0_55], %54 {strides = array<i32>} : memref<16x32xf32, #tpu.memory_space<vmem>>, vector<1x32xf32>,
    %c0_56 = arith.constant 0 : index
    %c7_57 = arith.constant 7 : index
    %56 = memref.load %arg1[%c0_56, %c7_57] : memref<2x8xi32, #tpu.memory_space<smem>>
    %57 = arith.index_cast %56 : i32 to index
    %c0_58 = arith.constant 0 : index
    %58 = vector.load %arg2[%57, %c0_58] : memref<100x32xf32, #tpu.memory_space<vmem>>, vector<1x32xf32>
    %c14 = arith.constant 14 : index
    %c0_59 = arith.constant 0 : index
    %59 = vector.load %arg10[%c14, %c0_59] : memref<16x32xf32, #tpu.memory_space<vmem>>, vector<1x32xf32>
    tpu.vector_store %arg10[%c14, %c0_59], %58 {strides = array<i32>} : memref<16x32xf32, #tpu.memory_space<vmem>>, vector<1x32xf32>,
    %c1_60 = arith.constant 1 : index
    %c7_61 = arith.constant 7 : index
    %60 = memref.load %arg1[%c1_60, %c7_61] : memref<2x8xi32, #tpu.memory_space<smem>>
    %61 = arith.index_cast %60 : i32 to index
    %c0_62 = arith.constant 0 : index
    %62 = vector.load %arg2[%61, %c0_62] : memref<100x32xf32, #tpu.memory_space<vmem>>, vector<1x32xf32>
    %c15 = arith.constant 15 : index
    %c0_63 = arith.constant 0 : index
    %63 = vector.load %arg10[%c15, %c0_63] : memref<16x32xf32, #tpu.memory_space<vmem>>, vector<1x32xf32>
    tpu.vector_store %arg10[%c15, %c0_63], %62 {strides = array<i32>} : memref<16x32xf32, #tpu.memory_space<vmem>>, vector<1x32xf32>,
    %c0_64 = arith.constant 0 : index
    %c0_65 = arith.constant 0 : index
    %64 = vector.load %arg10[%c0_64, %c0_65] : memref<16x32xf32, #tpu.memory_space<vmem>>, vector<16x32xf32>
    %c0_66 = arith.constant 0 : index
    %c0_67 = arith.constant 0 : index
    %65 = vector.load %arg3[%c0_66, %c0_67] : memref<32x256xf32, #tpu.memory_space<vmem>>, vector<32x256xf32>
    %c0_68 = arith.constant 0 : index
    %c0_69 = arith.constant 0 : index
    %66 = vector.load %arg6[%c0_68, %c0_69] : memref<1x256xf32, #tpu.memory_space<vmem>>, vector<1x256xf32>
    %c0_70 = arith.constant 0 : index
    %c0_71 = arith.constant 0 : index
    %67 = vector.load %arg4[%c0_70, %c0_71] : memref<128x128xf32, #tpu.memory_space<vmem>>, vector<128x128xf32>
    %c0_72 = arith.constant 0 : index
    %c0_73 = arith.constant 0 : index
    %68 = vector.load %arg5[%c0_72, %c0_73] : memref<128x128xf32, #tpu.memory_space<vmem>>, vector<128x128xf32>
    %c0_74 = arith.constant 0 : index
    %c0_75 = arith.constant 0 : index
    %69 = vector.load %arg7[%c0_74, %c0_75] : memref<256x8xf32, #tpu.memory_space<vmem>>, vector<256x8xf32>
    %c0_76 = arith.constant 0 : index
    %c0_77 = arith.constant 0 : index
    %70 = vector.load %arg8[%c0_76, %c0_77] : memref<1x8xf32, #tpu.memory_space<vmem>>, vector<1x8xf32>
    %cst = arith.constant dense<0.000000e+00> : vector<16x256xf32>
    %71 = tpu.matmul %64, %65, %cst {dimension_numbers = #tpu.dot_dimension_numbers<[1], [0], [0], [1], [0, 0, 1, 1], [], []>} : vector<16x32xf32>, vector<32x256xf32>, vector<16x256xf32> -> vector<16x256xf32>
    %72 = vector.broadcast %66 : vector<1x256xf32> to vector<16x256xf32>
    %73 = arith.addf %71, %72 : vector<16x256xf32>
    %74 = vector.extract_strided_slice %73 {offsets = [0, 0], sizes = [16, 128], strides = [1, 1]} : vector<16x256xf32> to vector<16x128xf32>
    %75 = vector.extract_strided_slice %73 {offsets = [0, 128], sizes = [16, 128], strides = [1, 1]} : vector<16x256xf32> to vector<16x128xf32>
    %cst_78 = arith.constant 0.000000e+00 : f32
    %76 = vector.broadcast %cst_78 : f32 to vector<2x128xf32>
    %cst_79 = arith.constant 0.000000e+00 : f32
    %77 = vector.broadcast %cst_79 : f32 to vector<2x128xf32>
    %78 = vector.extract_strided_slice %74 {offsets = [0, 0], sizes = [2, 128], strides = [1, 1]} : vector<16x128xf32> to vector<2x128xf32>
    %cst_80 = arith.constant dense<0.000000e+00> : vector<2x128xf32>
    %79 = tpu.matmul %77, %67, %cst_80 {dimension_numbers = #tpu.dot_dimension_numbers<[1], [0], [0], [1], [0, 0, 1, 1], [], []>} : vector<2x128xf32>, vector<128x128xf32>, vector<2x128xf32> -> vector<2x128xf32>
    %80 = arith.addf %78, %79 : vector<2x128xf32>
    %81 = arith.negf %80 : vector<2x128xf32>
    %82 = math.exp %81 : vector<2x128xf32>
    %cst_81 = arith.constant 1.000000e+00 : f32
    %83 = vector.broadcast %cst_81 : f32 to vector<2x128xf32>
    %84 = arith.addf %83, %82 : vector<2x128xf32>
    %85 = arith.divf %83, %84 : vector<2x128xf32>
    %86 = math.tanh %80 : vector<2x128xf32>
    %c96_i32 = arith.constant 96 : i32
    %87 = tpu.dynamic_rotate %85 by %c96_i32 dim 1 : vector<2x128xf32>, i32 -> vector<2x128xf32>
    %88 = arith.mulf %87, %76 : vector<2x128xf32>
    %c64_i32 = arith.constant 64 : i32
    %89 = tpu.dynamic_rotate %86 by %c64_i32 dim 1 : vector<2x128xf32>, i32 -> vector<2x128xf32>
    %90 = arith.mulf %85, %89 : vector<2x128xf32>
    %91 = arith.addf %88, %90 : vector<2x128xf32>
    %c32_i32 = arith.constant 32 : i32
    %92 = tpu.dynamic_rotate %85 by %c32_i32 dim 1 : vector<2x128xf32>, i32 -> vector<2x128xf32>
    %93 = math.tanh %91 : vector<2x128xf32>
    %94 = arith.mulf %92, %93 : vector<2x128xf32>
    %c0_82 = arith.constant 0 : index
    %c0_83 = arith.constant 0 : index
    %95 = vector.load %arg11[%c0_82, %c0_83] : memref<16x256xf32, #tpu.memory_space<vmem>>, vector<2x128xf32>
    tpu.vector_store %arg11[%c0_82, %c0_83], %94 {strides = array<i32>} : memref<16x256xf32, #tpu.memory_space<vmem>>, vector<2x128xf32>,
    %96 = vector.extract_strided_slice %74 {offsets = [2, 0], sizes = [2, 128], strides = [1, 1]} : vector<16x128xf32> to vector<2x128xf32>
    %cst_84 = arith.constant dense<0.000000e+00> : vector<2x128xf32>
    %97 = tpu.matmul %94, %67, %cst_84 {dimension_numbers = #tpu.dot_dimension_numbers<[1], [0], [0], [1], [0, 0, 1, 1], [], []>} : vector<2x128xf32>, vector<128x128xf32>, vector<2x128xf32> -> vector<2x128xf32>
    %98 = arith.addf %96, %97 : vector<2x128xf32>
    %99 = arith.negf %98 : vector<2x128xf32>
    %100 = math.exp %99 : vector<2x128xf32>
    %cst_85 = arith.constant 1.000000e+00 : f32
    %101 = vector.broadcast %cst_85 : f32 to vector<2x128xf32>
    %102 = arith.addf %101, %100 : vector<2x128xf32>
    %103 = arith.divf %101, %102 : vector<2x128xf32>
    %104 = math.tanh %98 : vector<2x128xf32>
    %c96_i32_86 = arith.constant 96 : i32
    %105 = tpu.dynamic_rotate %103 by %c96_i32_86 dim 1 : vector<2x128xf32>, i32 -> vector<2x128xf32>
    %106 = arith.mulf %105, %91 : vector<2x128xf32>
    %c64_i32_87 = arith.constant 64 : i32
    %107 = tpu.dynamic_rotate %104 by %c64_i32_87 dim 1 : vector<2x128xf32>, i32 -> vector<2x128xf32>
    %108 = arith.mulf %103, %107 : vector<2x128xf32>
    %109 = arith.addf %106, %108 : vector<2x128xf32>
    %c32_i32_88 = arith.constant 32 : i32
    %110 = tpu.dynamic_rotate %103 by %c32_i32_88 dim 1 : vector<2x128xf32>, i32 -> vector<2x128xf32>
    %111 = math.tanh %109 : vector<2x128xf32>
    %112 = arith.mulf %110, %111 : vector<2x128xf32>
    %c2_89 = arith.constant 2 : index
    %c0_90 = arith.constant 0 : index
    %113 = vector.load %arg11[%c2_89, %c0_90] : memref<16x256xf32, #tpu.memory_space<vmem>>, vector<2x128xf32>
    tpu.vector_store %arg11[%c2_89, %c0_90], %112 {strides = array<i32>} : memref<16x256xf32, #tpu.memory_space<vmem>>, vector<2x128xf32>,
    %114 = vector.extract_strided_slice %74 {offsets = [4, 0], sizes = [2, 128], strides = [1, 1]} : vector<16x128xf32> to vector<2x128xf32>
    %cst_91 = arith.constant dense<0.000000e+00> : vector<2x128xf32>
    %115 = tpu.matmul %112, %67, %cst_91 {dimension_numbers = #tpu.dot_dimension_numbers<[1], [0], [0], [1], [0, 0, 1, 1], [], []>} : vector<2x128xf32>, vector<128x128xf32>, vector<2x128xf32> -> vector<2x128xf32>
    %116 = arith.addf %114, %115 : vector<2x128xf32>
    %117 = arith.negf %116 : vector<2x128xf32>
    %118 = math.exp %117 : vector<2x128xf32>
    %cst_92 = arith.constant 1.000000e+00 : f32
    %119 = vector.broadcast %cst_92 : f32 to vector<2x128xf32>
    %120 = arith.addf %119, %118 : vector<2x128xf32>
    %121 = arith.divf %119, %120 : vector<2x128xf32>
    %122 = math.tanh %116 : vector<2x128xf32>
    %c96_i32_93 = arith.constant 96 : i32
    %123 = tpu.dynamic_rotate %121 by %c96_i32_93 dim 1 : vector<2x128xf32>, i32 -> vector<2x128xf32>
    %124 = arith.mulf %123, %109 : vector<2x128xf32>
    %c64_i32_94 = arith.constant 64 : i32
    %125 = tpu.dynamic_rotate %122 by %c64_i32_94 dim 1 : vector<2x128xf32>, i32 -> vector<2x128xf32>
    %126 = arith.mulf %121, %125 : vector<2x128xf32>
    %127 = arith.addf %124, %126 : vector<2x128xf32>
    %c32_i32_95 = arith.constant 32 : i32
    %128 = tpu.dynamic_rotate %121 by %c32_i32_95 dim 1 : vector<2x128xf32>, i32 -> vector<2x128xf32>
    %129 = math.tanh %127 : vector<2x128xf32>
    %130 = arith.mulf %128, %129 : vector<2x128xf32>
    %c4_96 = arith.constant 4 : index
    %c0_97 = arith.constant 0 : index
    %131 = vector.load %arg11[%c4_96, %c0_97] : memref<16x256xf32, #tpu.memory_space<vmem>>, vector<2x128xf32>
    tpu.vector_store %arg11[%c4_96, %c0_97], %130 {strides = array<i32>} : memref<16x256xf32, #tpu.memory_space<vmem>>, vector<2x128xf32>,
    %132 = vector.extract_strided_slice %74 {offsets = [6, 0], sizes = [2, 128], strides = [1, 1]} : vector<16x128xf32> to vector<2x128xf32>
    %cst_98 = arith.constant dense<0.000000e+00> : vector<2x128xf32>
    %133 = tpu.matmul %130, %67, %cst_98 {dimension_numbers = #tpu.dot_dimension_numbers<[1], [0], [0], [1], [0, 0, 1, 1], [], []>} : vector<2x128xf32>, vector<128x128xf32>, vector<2x128xf32> -> vector<2x128xf32>
    %134 = arith.addf %132, %133 : vector<2x128xf32>
    %135 = arith.negf %134 : vector<2x128xf32>
    %136 = math.exp %135 : vector<2x128xf32>
    %cst_99 = arith.constant 1.000000e+00 : f32
    %137 = vector.broadcast %cst_99 : f32 to vector<2x128xf32>
    %138 = arith.addf %137, %136 : vector<2x128xf32>
    %139 = arith.divf %137, %138 : vector<2x128xf32>
    %140 = math.tanh %134 : vector<2x128xf32>
    %c96_i32_100 = arith.constant 96 : i32
    %141 = tpu.dynamic_rotate %139 by %c96_i32_100 dim 1 : vector<2x128xf32>, i32 -> vector<2x128xf32>
    %142 = arith.mulf %141, %127 : vector<2x128xf32>
    %c64_i32_101 = arith.constant 64 : i32
    %143 = tpu.dynamic_rotate %140 by %c64_i32_101 dim 1 : vector<2x128xf32>, i32 -> vector<2x128xf32>
    %144 = arith.mulf %139, %143 : vector<2x128xf32>
    %145 = arith.addf %142, %144 : vector<2x128xf32>
    %c32_i32_102 = arith.constant 32 : i32
    %146 = tpu.dynamic_rotate %139 by %c32_i32_102 dim 1 : vector<2x128xf32>, i32 -> vector<2x128xf32>
    %147 = math.tanh %145 : vector<2x128xf32>
    %148 = arith.mulf %146, %147 : vector<2x128xf32>
    %c6_103 = arith.constant 6 : index
    %c0_104 = arith.constant 0 : index
    %149 = vector.load %arg11[%c6_103, %c0_104] : memref<16x256xf32, #tpu.memory_space<vmem>>, vector<2x128xf32>
    tpu.vector_store %arg11[%c6_103, %c0_104], %148 {strides = array<i32>} : memref<16x256xf32, #tpu.memory_space<vmem>>, vector<2x128xf32>,
    %150 = vector.extract_strided_slice %74 {offsets = [8, 0], sizes = [2, 128], strides = [1, 1]} : vector<16x128xf32> to vector<2x128xf32>
    %cst_105 = arith.constant dense<0.000000e+00> : vector<2x128xf32>
    %151 = tpu.matmul %148, %67, %cst_105 {dimension_numbers = #tpu.dot_dimension_numbers<[1], [0], [0], [1], [0, 0, 1, 1], [], []>} : vector<2x128xf32>, vector<128x128xf32>, vector<2x128xf32> -> vector<2x128xf32>
    %152 = arith.addf %150, %151 : vector<2x128xf32>
    %153 = arith.negf %152 : vector<2x128xf32>
    %154 = math.exp %153 : vector<2x128xf32>
    %cst_106 = arith.constant 1.000000e+00 : f32
    %155 = vector.broadcast %cst_106 : f32 to vector<2x128xf32>
    %156 = arith.addf %155, %154 : vector<2x128xf32>
    %157 = arith.divf %155, %156 : vector<2x128xf32>
    %158 = math.tanh %152 : vector<2x128xf32>
    %c96_i32_107 = arith.constant 96 : i32
    %159 = tpu.dynamic_rotate %157 by %c96_i32_107 dim 1 : vector<2x128xf32>, i32 -> vector<2x128xf32>
    %160 = arith.mulf %159, %145 : vector<2x128xf32>
    %c64_i32_108 = arith.constant 64 : i32
    %161 = tpu.dynamic_rotate %158 by %c64_i32_108 dim 1 : vector<2x128xf32>, i32 -> vector<2x128xf32>
    %162 = arith.mulf %157, %161 : vector<2x128xf32>
    %163 = arith.addf %160, %162 : vector<2x128xf32>
    %c32_i32_109 = arith.constant 32 : i32
    %164 = tpu.dynamic_rotate %157 by %c32_i32_109 dim 1 : vector<2x128xf32>, i32 -> vector<2x128xf32>
    %165 = math.tanh %163 : vector<2x128xf32>
    %166 = arith.mulf %164, %165 : vector<2x128xf32>
    %c8_110 = arith.constant 8 : index
    %c0_111 = arith.constant 0 : index
    %167 = vector.load %arg11[%c8_110, %c0_111] : memref<16x256xf32, #tpu.memory_space<vmem>>, vector<2x128xf32>
    tpu.vector_store %arg11[%c8_110, %c0_111], %166 {strides = array<i32>} : memref<16x256xf32, #tpu.memory_space<vmem>>, vector<2x128xf32>,
    %168 = vector.extract_strided_slice %74 {offsets = [10, 0], sizes = [2, 128], strides = [1, 1]} : vector<16x128xf32> to vector<2x128xf32>
    %cst_112 = arith.constant dense<0.000000e+00> : vector<2x128xf32>
    %169 = tpu.matmul %166, %67, %cst_112 {dimension_numbers = #tpu.dot_dimension_numbers<[1], [0], [0], [1], [0, 0, 1, 1], [], []>} : vector<2x128xf32>, vector<128x128xf32>, vector<2x128xf32> -> vector<2x128xf32>
    %170 = arith.addf %168, %169 : vector<2x128xf32>
    %171 = arith.negf %170 : vector<2x128xf32>
    %172 = math.exp %171 : vector<2x128xf32>
    %cst_113 = arith.constant 1.000000e+00 : f32
    %173 = vector.broadcast %cst_113 : f32 to vector<2x128xf32>
    %174 = arith.addf %173, %172 : vector<2x128xf32>
    %175 = arith.divf %173, %174 : vector<2x128xf32>
    %176 = math.tanh %170 : vector<2x128xf32>
    %c96_i32_114 = arith.constant 96 : i32
    %177 = tpu.dynamic_rotate %175 by %c96_i32_114 dim 1 : vector<2x128xf32>, i32 -> vector<2x128xf32>
    %178 = arith.mulf %177, %163 : vector<2x128xf32>
    %c64_i32_115 = arith.constant 64 : i32
    %179 = tpu.dynamic_rotate %176 by %c64_i32_115 dim 1 : vector<2x128xf32>, i32 -> vector<2x128xf32>
    %180 = arith.mulf %175, %179 : vector<2x128xf32>
    %181 = arith.addf %178, %180 : vector<2x128xf32>
    %c32_i32_116 = arith.constant 32 : i32
    %182 = tpu.dynamic_rotate %175 by %c32_i32_116 dim 1 : vector<2x128xf32>, i32 -> vector<2x128xf32>
    %183 = math.tanh %181 : vector<2x128xf32>
    %184 = arith.mulf %182, %183 : vector<2x128xf32>
    %c10_117 = arith.constant 10 : index
    %c0_118 = arith.constant 0 : index
    %185 = vector.load %arg11[%c10_117, %c0_118] : memref<16x256xf32, #tpu.memory_space<vmem>>, vector<2x128xf32>
    tpu.vector_store %arg11[%c10_117, %c0_118], %184 {strides = array<i32>} : memref<16x256xf32, #tpu.memory_space<vmem>>, vector<2x128xf32>,
    %186 = vector.extract_strided_slice %74 {offsets = [12, 0], sizes = [2, 128], strides = [1, 1]} : vector<16x128xf32> to vector<2x128xf32>
    %cst_119 = arith.constant dense<0.000000e+00> : vector<2x128xf32>
    %187 = tpu.matmul %184, %67, %cst_119 {dimension_numbers = #tpu.dot_dimension_numbers<[1], [0], [0], [1], [0, 0, 1, 1], [], []>} : vector<2x128xf32>, vector<128x128xf32>, vector<2x128xf32> -> vector<2x128xf32>
    %188 = arith.addf %186, %187 : vector<2x128xf32>
    %189 = arith.negf %188 : vector<2x128xf32>
    %190 = math.exp %189 : vector<2x128xf32>
    %cst_120 = arith.constant 1.000000e+00 : f32
    %191 = vector.broadcast %cst_120 : f32 to vector<2x128xf32>
    %192 = arith.addf %191, %190 : vector<2x128xf32>
    %193 = arith.divf %191, %192 : vector<2x128xf32>
    %194 = math.tanh %188 : vector<2x128xf32>
    %c96_i32_121 = arith.constant 96 : i32
    %195 = tpu.dynamic_rotate %193 by %c96_i32_121 dim 1 : vector<2x128xf32>, i32 -> vector<2x128xf32>
    %196 = arith.mulf %195, %181 : vector<2x128xf32>
    %c64_i32_122 = arith.constant 64 : i32
    %197 = tpu.dynamic_rotate %194 by %c64_i32_122 dim 1 : vector<2x128xf32>, i32 -> vector<2x128xf32>
    %198 = arith.mulf %193, %197 : vector<2x128xf32>
    %199 = arith.addf %196, %198 : vector<2x128xf32>
    %c32_i32_123 = arith.constant 32 : i32
    %200 = tpu.dynamic_rotate %193 by %c32_i32_123 dim 1 : vector<2x128xf32>, i32 -> vector<2x128xf32>
    %201 = math.tanh %199 : vector<2x128xf32>
    %202 = arith.mulf %200, %201 : vector<2x128xf32>
    %c12_124 = arith.constant 12 : index
    %c0_125 = arith.constant 0 : index
    %203 = vector.load %arg11[%c12_124, %c0_125] : memref<16x256xf32, #tpu.memory_space<vmem>>, vector<2x128xf32>
    tpu.vector_store %arg11[%c12_124, %c0_125], %202 {strides = array<i32>} : memref<16x256xf32, #tpu.memory_space<vmem>>, vector<2x128xf32>,
    %204 = vector.extract_strided_slice %74 {offsets = [14, 0], sizes = [2, 128], strides = [1, 1]} : vector<16x128xf32> to vector<2x128xf32>
    %cst_126 = arith.constant dense<0.000000e+00> : vector<2x128xf32>
    %205 = tpu.matmul %202, %67, %cst_126 {dimension_numbers = #tpu.dot_dimension_numbers<[1], [0], [0], [1], [0, 0, 1, 1], [], []>} : vector<2x128xf32>, vector<128x128xf32>, vector<2x128xf32> -> vector<2x128xf32>
    %206 = arith.addf %204, %205 : vector<2x128xf32>
    %207 = arith.negf %206 : vector<2x128xf32>
    %208 = math.exp %207 : vector<2x128xf32>
    %cst_127 = arith.constant 1.000000e+00 : f32
    %209 = vector.broadcast %cst_127 : f32 to vector<2x128xf32>
    %210 = arith.addf %209, %208 : vector<2x128xf32>
    %211 = arith.divf %209, %210 : vector<2x128xf32>
    %212 = math.tanh %206 : vector<2x128xf32>
    %c96_i32_128 = arith.constant 96 : i32
    %213 = tpu.dynamic_rotate %211 by %c96_i32_128 dim 1 : vector<2x128xf32>, i32 -> vector<2x128xf32>
    %214 = arith.mulf %213, %199 : vector<2x128xf32>
    %c64_i32_129 = arith.constant 64 : i32
    %215 = tpu.dynamic_rotate %212 by %c64_i32_129 dim 1 : vector<2x128xf32>, i32 -> vector<2x128xf32>
    %216 = arith.mulf %211, %215 : vector<2x128xf32>
    %217 = arith.addf %214, %216 : vector<2x128xf32>
    %c32_i32_130 = arith.constant 32 : i32
    %218 = tpu.dynamic_rotate %211 by %c32_i32_130 dim 1 : vector<2x128xf32>, i32 -> vector<2x128xf32>
    %219 = math.tanh %217 : vector<2x128xf32>
    %220 = arith.mulf %218, %219 : vector<2x128xf32>
    %c14_131 = arith.constant 14 : index
    %c0_132 = arith.constant 0 : index
    %221 = vector.load %arg11[%c14_131, %c0_132] : memref<16x256xf32, #tpu.memory_space<vmem>>, vector<2x128xf32>
    tpu.vector_store %arg11[%c14_131, %c0_132], %220 {strides = array<i32>} : memref<16x256xf32, #tpu.memory_space<vmem>>, vector<2x128xf32>,
    %cst_133 = arith.constant dense<0.000000e+00> : vector<2x128xf32>
    %222 = tpu.matmul %220, %68, %cst_133 {dimension_numbers = #tpu.dot_dimension_numbers<[1], [0], [0], [1], [0, 0, 1, 1], [], []>} : vector<2x128xf32>, vector<128x128xf32>, vector<2x128xf32> -> vector<2x128xf32>
    %cst_134 = arith.constant 0.000000e+00 : f32
    %223 = vector.broadcast %cst_134 : f32 to vector<2x128xf32>
    %224 = vector.extract_strided_slice %75 {offsets = [14, 0], sizes = [2, 128], strides = [1, 1]} : vector<16x128xf32> to vector<2x128xf32>
    %225 = arith.addf %224, %222 : vector<2x128xf32>
    %226 = arith.negf %225 : vector<2x128xf32>
    %227 = math.exp %226 : vector<2x128xf32>
    %cst_135 = arith.constant 1.000000e+00 : f32
    %228 = vector.broadcast %cst_135 : f32 to vector<2x128xf32>
    %229 = arith.addf %228, %227 : vector<2x128xf32>
    %230 = arith.divf %228, %229 : vector<2x128xf32>
    %231 = math.tanh %225 : vector<2x128xf32>
    %c96_i32_136 = arith.constant 96 : i32
    %232 = tpu.dynamic_rotate %230 by %c96_i32_136 dim 1 : vector<2x128xf32>, i32 -> vector<2x128xf32>
    %233 = arith.mulf %232, %223 : vector<2x128xf32>
    %c64_i32_137 = arith.constant 64 : i32
    %234 = tpu.dynamic_rotate %231 by %c64_i32_137 dim 1 : vector<2x128xf32>, i32 -> vector<2x128xf32>
    %235 = arith.mulf %230, %234 : vector<2x128xf32>
    %236 = arith.addf %233, %235 : vector<2x128xf32>
    %c32_i32_138 = arith.constant 32 : i32
    %237 = tpu.dynamic_rotate %230 by %c32_i32_138 dim 1 : vector<2x128xf32>, i32 -> vector<2x128xf32>
    %238 = math.tanh %236 : vector<2x128xf32>
    %239 = arith.mulf %237, %238 : vector<2x128xf32>
    %c14_139 = arith.constant 14 : index
    %c128 = arith.constant 128 : index
    %240 = vector.load %arg11[%c14_139, %c128] : memref<16x256xf32, #tpu.memory_space<vmem>>, vector<2x128xf32>
    tpu.vector_store %arg11[%c14_139, %c128], %239 {strides = array<i32>} : memref<16x256xf32, #tpu.memory_space<vmem>>, vector<2x128xf32>,
    %241 = vector.extract_strided_slice %75 {offsets = [12, 0], sizes = [2, 128], strides = [1, 1]} : vector<16x128xf32> to vector<2x128xf32>
    %242 = arith.addf %241, %222 : vector<2x128xf32>
    %243 = arith.negf %242 : vector<2x128xf32>
    %244 = math.exp %243 : vector<2x128xf32>
    %cst_140 = arith.constant 1.000000e+00 : f32
    %245 = vector.broadcast %cst_140 : f32 to vector<2x128xf32>
    %246 = arith.addf %245, %244 : vector<2x128xf32>
    %247 = arith.divf %245, %246 : vector<2x128xf32>
    %248 = math.tanh %242 : vector<2x128xf32>
    %c96_i32_141 = arith.constant 96 : i32
    %249 = tpu.dynamic_rotate %247 by %c96_i32_141 dim 1 : vector<2x128xf32>, i32 -> vector<2x128xf32>
    %250 = arith.mulf %249, %236 : vector<2x128xf32>
    %c64_i32_142 = arith.constant 64 : i32
    %251 = tpu.dynamic_rotate %248 by %c64_i32_142 dim 1 : vector<2x128xf32>, i32 -> vector<2x128xf32>
    %252 = arith.mulf %247, %251 : vector<2x128xf32>
    %253 = arith.addf %250, %252 : vector<2x128xf32>
    %c32_i32_143 = arith.constant 32 : i32
    %254 = tpu.dynamic_rotate %247 by %c32_i32_143 dim 1 : vector<2x128xf32>, i32 -> vector<2x128xf32>
    %255 = math.tanh %253 : vector<2x128xf32>
    %256 = arith.mulf %254, %255 : vector<2x128xf32>
    %c12_144 = arith.constant 12 : index
    %c128_145 = arith.constant 128 : index
    %257 = vector.load %arg11[%c12_144, %c128_145] : memref<16x256xf32, #tpu.memory_space<vmem>>, vector<2x128xf32>
    tpu.vector_store %arg11[%c12_144, %c128_145], %256 {strides = array<i32>} : memref<16x256xf32, #tpu.memory_space<vmem>>, vector<2x128xf32>,
    %258 = vector.extract_strided_slice %75 {offsets = [10, 0], sizes = [2, 128], strides = [1, 1]} : vector<16x128xf32> to vector<2x128xf32>
    %259 = arith.addf %258, %222 : vector<2x128xf32>
    %260 = arith.negf %259 : vector<2x128xf32>
    %261 = math.exp %260 : vector<2x128xf32>
    %cst_146 = arith.constant 1.000000e+00 : f32
    %262 = vector.broadcast %cst_146 : f32 to vector<2x128xf32>
    %263 = arith.addf %262, %261 : vector<2x128xf32>
    %264 = arith.divf %262, %263 : vector<2x128xf32>
    %265 = math.tanh %259 : vector<2x128xf32>
    %c96_i32_147 = arith.constant 96 : i32
    %266 = tpu.dynamic_rotate %264 by %c96_i32_147 dim 1 : vector<2x128xf32>, i32 -> vector<2x128xf32>
    %267 = arith.mulf %266, %253 : vector<2x128xf32>
    %c64_i32_148 = arith.constant 64 : i32
    %268 = tpu.dynamic_rotate %265 by %c64_i32_148 dim 1 : vector<2x128xf32>, i32 -> vector<2x128xf32>
    %269 = arith.mulf %264, %268 : vector<2x128xf32>
    %270 = arith.addf %267, %269 : vector<2x128xf32>
    %c32_i32_149 = arith.constant 32 : i32
    %271 = tpu.dynamic_rotate %264 by %c32_i32_149 dim 1 : vector<2x128xf32>, i32 -> vector<2x128xf32>
    %272 = math.tanh %270 : vector<2x128xf32>
    %273 = arith.mulf %271, %272 : vector<2x128xf32>
    %c10_150 = arith.constant 10 : index
    %c128_151 = arith.constant 128 : index
    %274 = vector.load %arg11[%c10_150, %c128_151] : memref<16x256xf32, #tpu.memory_space<vmem>>, vector<2x128xf32>
    tpu.vector_store %arg11[%c10_150, %c128_151], %273 {strides = array<i32>} : memref<16x256xf32, #tpu.memory_space<vmem>>, vector<2x128xf32>,
    %275 = vector.extract_strided_slice %75 {offsets = [8, 0], sizes = [2, 128], strides = [1, 1]} : vector<16x128xf32> to vector<2x128xf32>
    %276 = arith.addf %275, %222 : vector<2x128xf32>
    %277 = arith.negf %276 : vector<2x128xf32>
    %278 = math.exp %277 : vector<2x128xf32>
    %cst_152 = arith.constant 1.000000e+00 : f32
    %279 = vector.broadcast %cst_152 : f32 to vector<2x128xf32>
    %280 = arith.addf %279, %278 : vector<2x128xf32>
    %281 = arith.divf %279, %280 : vector<2x128xf32>
    %282 = math.tanh %276 : vector<2x128xf32>
    %c96_i32_153 = arith.constant 96 : i32
    %283 = tpu.dynamic_rotate %281 by %c96_i32_153 dim 1 : vector<2x128xf32>, i32 -> vector<2x128xf32>
    %284 = arith.mulf %283, %270 : vector<2x128xf32>
    %c64_i32_154 = arith.constant 64 : i32
    %285 = tpu.dynamic_rotate %282 by %c64_i32_154 dim 1 : vector<2x128xf32>, i32 -> vector<2x128xf32>
    %286 = arith.mulf %281, %285 : vector<2x128xf32>
    %287 = arith.addf %284, %286 : vector<2x128xf32>
    %c32_i32_155 = arith.constant 32 : i32
    %288 = tpu.dynamic_rotate %281 by %c32_i32_155 dim 1 : vector<2x128xf32>, i32 -> vector<2x128xf32>
    %289 = math.tanh %287 : vector<2x128xf32>
    %290 = arith.mulf %288, %289 : vector<2x128xf32>
    %c8_156 = arith.constant 8 : index
    %c128_157 = arith.constant 128 : index
    %291 = vector.load %arg11[%c8_156, %c128_157] : memref<16x256xf32, #tpu.memory_space<vmem>>, vector<2x128xf32>
    tpu.vector_store %arg11[%c8_156, %c128_157], %290 {strides = array<i32>} : memref<16x256xf32, #tpu.memory_space<vmem>>, vector<2x128xf32>,
    %292 = vector.extract_strided_slice %75 {offsets = [6, 0], sizes = [2, 128], strides = [1, 1]} : vector<16x128xf32> to vector<2x128xf32>
    %293 = arith.addf %292, %222 : vector<2x128xf32>
    %294 = arith.negf %293 : vector<2x128xf32>
    %295 = math.exp %294 : vector<2x128xf32>
    %cst_158 = arith.constant 1.000000e+00 : f32
    %296 = vector.broadcast %cst_158 : f32 to vector<2x128xf32>
    %297 = arith.addf %296, %295 : vector<2x128xf32>
    %298 = arith.divf %296, %297 : vector<2x128xf32>
    %299 = math.tanh %293 : vector<2x128xf32>
    %c96_i32_159 = arith.constant 96 : i32
    %300 = tpu.dynamic_rotate %298 by %c96_i32_159 dim 1 : vector<2x128xf32>, i32 -> vector<2x128xf32>
    %301 = arith.mulf %300, %287 : vector<2x128xf32>
    %c64_i32_160 = arith.constant 64 : i32
    %302 = tpu.dynamic_rotate %299 by %c64_i32_160 dim 1 : vector<2x128xf32>, i32 -> vector<2x128xf32>
    %303 = arith.mulf %298, %302 : vector<2x128xf32>
    %304 = arith.addf %301, %303 : vector<2x128xf32>
    %c32_i32_161 = arith.constant 32 : i32
    %305 = tpu.dynamic_rotate %298 by %c32_i32_161 dim 1 : vector<2x128xf32>, i32 -> vector<2x128xf32>
    %306 = math.tanh %304 : vector<2x128xf32>
    %307 = arith.mulf %305, %306 : vector<2x128xf32>
    %c6_162 = arith.constant 6 : index
    %c128_163 = arith.constant 128 : index
    %308 = vector.load %arg11[%c6_162, %c128_163] : memref<16x256xf32, #tpu.memory_space<vmem>>, vector<2x128xf32>
    tpu.vector_store %arg11[%c6_162, %c128_163], %307 {strides = array<i32>} : memref<16x256xf32, #tpu.memory_space<vmem>>, vector<2x128xf32>,
    %309 = vector.extract_strided_slice %75 {offsets = [4, 0], sizes = [2, 128], strides = [1, 1]} : vector<16x128xf32> to vector<2x128xf32>
    %310 = arith.addf %309, %222 : vector<2x128xf32>
    %311 = arith.negf %310 : vector<2x128xf32>
    %312 = math.exp %311 : vector<2x128xf32>
    %cst_164 = arith.constant 1.000000e+00 : f32
    %313 = vector.broadcast %cst_164 : f32 to vector<2x128xf32>
    %314 = arith.addf %313, %312 : vector<2x128xf32>
    %315 = arith.divf %313, %314 : vector<2x128xf32>
    %316 = math.tanh %310 : vector<2x128xf32>
    %c96_i32_165 = arith.constant 96 : i32
    %317 = tpu.dynamic_rotate %315 by %c96_i32_165 dim 1 : vector<2x128xf32>, i32 -> vector<2x128xf32>
    %318 = arith.mulf %317, %304 : vector<2x128xf32>
    %c64_i32_166 = arith.constant 64 : i32
    %319 = tpu.dynamic_rotate %316 by %c64_i32_166 dim 1 : vector<2x128xf32>, i32 -> vector<2x128xf32>
    %320 = arith.mulf %315, %319 : vector<2x128xf32>
    %321 = arith.addf %318, %320 : vector<2x128xf32>
    %c32_i32_167 = arith.constant 32 : i32
    %322 = tpu.dynamic_rotate %315 by %c32_i32_167 dim 1 : vector<2x128xf32>, i32 -> vector<2x128xf32>
    %323 = math.tanh %321 : vector<2x128xf32>
    %324 = arith.mulf %322, %323 : vector<2x128xf32>
    %c4_168 = arith.constant 4 : index
    %c128_169 = arith.constant 128 : index
    %325 = vector.load %arg11[%c4_168, %c128_169] : memref<16x256xf32, #tpu.memory_space<vmem>>, vector<2x128xf32>
    tpu.vector_store %arg11[%c4_168, %c128_169], %324 {strides = array<i32>} : memref<16x256xf32, #tpu.memory_space<vmem>>, vector<2x128xf32>,
    %326 = vector.extract_strided_slice %75 {offsets = [2, 0], sizes = [2, 128], strides = [1, 1]} : vector<16x128xf32> to vector<2x128xf32>
    %327 = arith.addf %326, %222 : vector<2x128xf32>
    %328 = arith.negf %327 : vector<2x128xf32>
    %329 = math.exp %328 : vector<2x128xf32>
    %cst_170 = arith.constant 1.000000e+00 : f32
    %330 = vector.broadcast %cst_170 : f32 to vector<2x128xf32>
    %331 = arith.addf %330, %329 : vector<2x128xf32>
    %332 = arith.divf %330, %331 : vector<2x128xf32>
    %333 = math.tanh %327 : vector<2x128xf32>
    %c96_i32_171 = arith.constant 96 : i32
    %334 = tpu.dynamic_rotate %332 by %c96_i32_171 dim 1 : vector<2x128xf32>, i32 -> vector<2x128xf32>
    %335 = arith.mulf %334, %321 : vector<2x128xf32>
    %c64_i32_172 = arith.constant 64 : i32
    %336 = tpu.dynamic_rotate %333 by %c64_i32_172 dim 1 : vector<2x128xf32>, i32 -> vector<2x128xf32>
    %337 = arith.mulf %332, %336 : vector<2x128xf32>
    %338 = arith.addf %335, %337 : vector<2x128xf32>
    %c32_i32_173 = arith.constant 32 : i32
    %339 = tpu.dynamic_rotate %332 by %c32_i32_173 dim 1 : vector<2x128xf32>, i32 -> vector<2x128xf32>
    %340 = math.tanh %338 : vector<2x128xf32>
    %341 = arith.mulf %339, %340 : vector<2x128xf32>
    %c2_174 = arith.constant 2 : index
    %c128_175 = arith.constant 128 : index
    %342 = vector.load %arg11[%c2_174, %c128_175] : memref<16x256xf32, #tpu.memory_space<vmem>>, vector<2x128xf32>
    tpu.vector_store %arg11[%c2_174, %c128_175], %341 {strides = array<i32>} : memref<16x256xf32, #tpu.memory_space<vmem>>, vector<2x128xf32>,
    %343 = vector.extract_strided_slice %75 {offsets = [0, 0], sizes = [2, 128], strides = [1, 1]} : vector<16x128xf32> to vector<2x128xf32>
    %344 = arith.addf %343, %222 : vector<2x128xf32>
    %345 = arith.negf %344 : vector<2x128xf32>
    %346 = math.exp %345 : vector<2x128xf32>
    %cst_176 = arith.constant 1.000000e+00 : f32
    %347 = vector.broadcast %cst_176 : f32 to vector<2x128xf32>
    %348 = arith.addf %347, %346 : vector<2x128xf32>
    %349 = arith.divf %347, %348 : vector<2x128xf32>
    %350 = math.tanh %344 : vector<2x128xf32>
    %c96_i32_177 = arith.constant 96 : i32
    %351 = tpu.dynamic_rotate %349 by %c96_i32_177 dim 1 : vector<2x128xf32>, i32 -> vector<2x128xf32>
    %352 = arith.mulf %351, %338 : vector<2x128xf32>
    %c64_i32_178 = arith.constant 64 : i32
    %353 = tpu.dynamic_rotate %350 by %c64_i32_178 dim 1 : vector<2x128xf32>, i32 -> vector<2x128xf32>
    %354 = arith.mulf %349, %353 : vector<2x128xf32>
    %355 = arith.addf %352, %354 : vector<2x128xf32>
    %c32_i32_179 = arith.constant 32 : i32
    %356 = tpu.dynamic_rotate %349 by %c32_i32_179 dim 1 : vector<2x128xf32>, i32 -> vector<2x128xf32>
    %357 = math.tanh %355 : vector<2x128xf32>
    %358 = arith.mulf %356, %357 : vector<2x128xf32>
    %c0_180 = arith.constant 0 : index
    %c128_181 = arith.constant 128 : index
    %359 = vector.load %arg11[%c0_180, %c128_181] : memref<16x256xf32, #tpu.memory_space<vmem>>, vector<2x128xf32>
    tpu.vector_store %arg11[%c0_180, %c128_181], %358 {strides = array<i32>} : memref<16x256xf32, #tpu.memory_space<vmem>>, vector<2x128xf32>,
    %c0_182 = arith.constant 0 : index
    %c0_183 = arith.constant 0 : index
    %360 = vector.load %arg11[%c0_182, %c0_183] : memref<16x256xf32, #tpu.memory_space<vmem>>, vector<16x256xf32>
    %cst_184 = arith.constant dense<0.000000e+00> : vector<16x8xf32>
    %361 = tpu.matmul %360, %69, %cst_184 {dimension_numbers = #tpu.dot_dimension_numbers<[1], [0], [0], [1], [0, 0, 1, 1], [], []>} : vector<16x256xf32>, vector<256x8xf32>, vector<16x8xf32> -> vector<16x8xf32>
    %362 = vector.broadcast %70 : vector<1x8xf32> to vector<16x8xf32>
    %363 = arith.addf %361, %362 : vector<16x8xf32>
    %c0_185 = arith.constant 0 : index
    %c0_186 = arith.constant 0 : index
    %364 = vector.load %arg9[%c0_185, %c0_186] : memref<16x8xf32, #tpu.memory_space<vmem>>, vector<16x8xf32>
    tpu.vector_store %arg9[%c0_185, %c0_186], %363 {strides = array<i32>} : memref<16x8xf32, #tpu.memory_space<vmem>>, vector<16x8xf32>,
    return
  }
  func.func @transform_0(%arg0: i32, %arg1: memref<2x8xi32, #tpu.memory_space<smem>>) -> (i32, i32) {
    %c0_i32 = arith.constant 0 : i32
    %c0_i32_0 = arith.constant 0 : i32
    %c0_i32_1 = arith.constant 0 : i32
    return %c0_i32, %c0_i32_0 : i32, i32
  }
  func.func @transform_1(%arg0: i32, %arg1: memref<2x8xi32, #tpu.memory_space<smem>>) -> (i32, i32) {
    %c0_i32 = arith.constant 0 : i32
    %c0_i32_0 = arith.constant 0 : i32
    %c0_i32_1 = arith.constant 0 : i32
    return %c0_i32, %c0_i32_0 : i32, i32
  }
  func.func @transform_2(%arg0: i32, %arg1: memref<2x8xi32, #tpu.memory_space<smem>>) -> (i32, i32) {
    %c0_i32 = arith.constant 0 : i32
    %c0_i32_0 = arith.constant 0 : i32
    %c0_i32_1 = arith.constant 0 : i32
    return %c0_i32, %c0_i32_0 : i32, i32
  }
  func.func @transform_3(%arg0: i32, %arg1: memref<2x8xi32, #tpu.memory_space<smem>>) -> (i32, i32) {
    %c0_i32 = arith.constant 0 : i32
    %c0_i32_0 = arith.constant 0 : i32
    %c0_i32_1 = arith.constant 0 : i32
    return %c0_i32, %c0_i32_0 : i32, i32
  }
  func.func @transform_4(%arg0: i32, %arg1: memref<2x8xi32, #tpu.memory_space<smem>>) -> (i32, i32) {
    %c0_i32 = arith.constant 0 : i32
    %c0_i32_0 = arith.constant 0 : i32
    %c0_i32_1 = arith.constant 0 : i32
    return %c0_i32, %c0_i32_0 : i32, i32
  }
  func.func @transform_5(%arg0: i32, %arg1: memref<2x8xi32, #tpu.memory_space<smem>>) -> (i32, i32) {
    %c0_i32 = arith.constant 0 : i32
    %c0_i32_0 = arith.constant 0 : i32
    %c0_i32_1 = arith.constant 0 : i32
    return %c0_i32, %c0_i32_0 : i32, i32
  }
  func.func @transform_6(%arg0: i32, %arg1: memref<2x8xi32, #tpu.memory_space<smem>>) -> (i32, i32) {
    %c0_i32 = arith.constant 0 : i32
    %c0_i32_0 = arith.constant 0 : i32
    %c0_i32_1 = arith.constant 0 : i32
    return %c0_i32, %c0_i32_0 : i32, i32
  }
  func.func @transform_7(%arg0: i32, %arg1: memref<2x8xi32, #tpu.memory_space<smem>>) -> (i32, i32) {
    %c0_i32 = arith.constant 0 : i32
    %c0_i32_0 = arith.constant 0 : i32
    %c0_i32_1 = arith.constant 0 : i32
    return %c0_i32, %c0_i32_0 : i32, i32
  }
}

</mosaic_0001>

<llo_original>
// kernel: tpu_custom_call.1
$region0: #{tpu_custom_call.1}
  #allocation0 [shape = 'u32[]', space=smem, size = 0x4, offset = 0x4, fixed_abs, tag = 'smem constant byte address 0x4 - core index']
  #allocation1 [shape = 'u32[72,128]{1,0:T(1,128)}', space=vmem, size = 0x9000, scoped, tag = 'internal scratch']
  #allocation2 [shape = 'f32[16,32]{1,0:T(8,128)}', space=vmem, size = 0x2000, scoped, tag = 'scratch operand']
  #allocation3 [shape = 'f32[16,256]{1,0:T(8,128)}', space=vmem, size = 0x4000, scoped, tag = 'scratch operand']
  #allocation4 [shape = 's32[1]{0}', space=sflag, size = 0x4, scoped, tag = 'scoped memory for tpu_custom_call.1']
  #allocation5 [shape = 'u8[1024]{0}', space=smem, size = 0x400, scoped, tag = 'prefetched SMEM operand 0']
  %s0 = inlined_call_operand.vmem [shape: s32[2,8], index: 0, kind: input, shape index: {}]
  %s1 = inlined_call_operand.vmem [shape: f32[100,32], index: 1, kind: input, shape index: {}]
  %s2 = inlined_call_operand.vmem [shape: f32[32,256], index: 2, kind: input, shape index: {}]
  %s3 = inlined_call_operand.vmem [shape: f32[128,128], index: 3, kind: input, shape index: {}]
  %s4 = inlined_call_operand.vmem [shape: f32[128,128], index: 4, kind: input, shape index: {}]
  %s5 = inlined_call_operand.vmem [shape: f32[1,256], index: 5, kind: input, shape index: {}]
  %s6 = inlined_call_operand.vmem [shape: f32[256,8], index: 6, kind: input, shape index: {}]
  %s7 = inlined_call_operand.vmem [shape: f32[1,8], index: 7, kind: input, shape index: {}]
  %s8 = inlined_call_operand.vmem [shape: f32[16,8], index: 8, kind: output, shape index: {}]
  %s9 = sld [smem:[#allocation0]]
  $region38: #{tpu_custom_call.1} parent=0
    _
  %s11 = ssub.s32 1, %s9
  %s12 = scalar_select 0, %s11, %s9
  %s14 = sshll.u32 %s0, 4
  %s15 = int_to_ptr.vmem [resolvable:$true] %s14
  %17 = dma.vmem_to_smem %s15, 32, [#allocation5], [#allocation4]
  %19 = dma.done [#allocation4], 32
  %20 = sfence
  // Predicated region
  $region2: #{tpu_custom_call.1} parent=0 // pred_check
    _
  $region3: #{tpu_custom_call.1} parent=0 // pred_check_branch
    %22 = sbr.rel (0) target = $region5
  $region4: #{tpu_custom_call.1} parent=0 // pred_region
    _
  $region5: #{tpu_custom_call.1} parent=0 // pred_fallthru
    _
  // Predicated region
  $region6: #{tpu_custom_call.1} parent=0 // pred_check
    _
  $region7: #{tpu_custom_call.1} parent=0 // pred_check_branch
    %24 = sbr.rel (0) target = $region9
  $region8: #{tpu_custom_call.1} parent=0 // pred_region
    _
  $region9: #{tpu_custom_call.1} parent=0 // pred_fallthru
    _
  // Predicated region
  $region10: #{tpu_custom_call.1} parent=0 // pred_check
    _
  $region11: #{tpu_custom_call.1} parent=0 // pred_check_branch
    %26 = sbr.rel (0) target = $region13
  $region12: #{tpu_custom_call.1} parent=0 // pred_region
    _
  $region13: #{tpu_custom_call.1} parent=0 // pred_fallthru
    _
  // Predicated region
  $region14: #{tpu_custom_call.1} parent=0 // pred_check
    _
  $region15: #{tpu_custom_call.1} parent=0 // pred_check_branch
    %28 = sbr.rel (0) target = $region17
  $region16: #{tpu_custom_call.1} parent=0 // pred_region
    _
  $region17: #{tpu_custom_call.1} parent=0 // pred_fallthru
    _
  // Predicated region
  $region18: #{tpu_custom_call.1} parent=0 // pred_check
    _
  $region19: #{tpu_custom_call.1} parent=0 // pred_check_branch
    %30 = sbr.rel (0) target = $region21
  $region20: #{tpu_custom_call.1} parent=0 // pred_region
    _
  $region21: #{tpu_custom_call.1} parent=0 // pred_fallthru
    _
  // Predicated region
  $region22: #{tpu_custom_call.1} parent=0 // pred_check
    _
  $region23: #{tpu_custom_call.1} parent=0 // pred_check_branch
    %32 = sbr.rel (0) target = $region25
  $region24: #{tpu_custom_call.1} parent=0 // pred_region
    _
  $region25: #{tpu_custom_call.1} parent=0 // pred_fallthru
    _
  // Predicated region
  $region26: #{tpu_custom_call.1} parent=0 // pred_check
    _
  $region27: #{tpu_custom_call.1} parent=0 // pred_check_branch
    %34 = sbr.rel (0) target = $region29
  $region28: #{tpu_custom_call.1} parent=0 // pred_region
    _
  $region29: #{tpu_custom_call.1} parent=0 // pred_fallthru
    _
  %s35 = sld [smem:[#allocation5]]
  %s36 = scalar_lea.vmem %s1, %s35
  %v37 = vld [vmem:[%s36] sm:$0x1]
  %vm38 = vcmask 253952
  %39 = vst.msk [vmem:[#allocation2] sm:$0x1] %vm38, %v37
  %s40 = sld [smem:[#allocation5 + $0x80]]
  %s41 = scalar_lea.vmem %s1, %s40
  %v42 = vld [vmem:[%s41] sm:$0x1]
  %43 = vst.msk [vmem:[#allocation2 + $0x1] sm:$0x1] %vm38, %v42
  %s44 = sld [smem:[#allocation5 + $0x1]]
  %s45 = scalar_lea.vmem %s1, %s44
  %v46 = vld [vmem:[%s45] sm:$0x1]
  %47 = vst.msk [vmem:[#allocation2 + $0x2] sm:$0x1] %vm38, %v46
  %s48 = sld [smem:[#allocation5 + $0x81]]
  %s49 = scalar_lea.vmem %s1, %s48
  %v50 = vld [vmem:[%s49] sm:$0x1]
  %51 = vst.msk [vmem:[#allocation2 + $0x3] sm:$0x1] %vm38, %v50
  %s52 = sld [smem:[#allocation5 + $0x2]]
  %s53 = scalar_lea.vmem %s1, %s52
  %v54 = vld [vmem:[%s53] sm:$0x1]
  %55 = vst.msk [vmem:[#allocation2 + $0x4] sm:$0x1] %vm38, %v54
  %s56 = sld [smem:[#allocation5 + $0x82]]
  %s57 = scalar_lea.vmem %s1, %s56
  %v58 = vld [vmem:[%s57] sm:$0x1]
  %59 = vst.msk [vmem:[#allocation2 + $0x5] sm:$0x1] %vm38, %v58
  %s60 = sld [smem:[#allocation5 + $0x3]]
  %s61 = scalar_lea.vmem %s1, %s60
  %v62 = vld [vmem:[%s61] sm:$0x1]
  %63 = vst.msk [vmem:[#allocation2 + $0x6] sm:$0x1] %vm38, %v62
  %s64 = sld [smem:[#allocation5 + $0x83]]
  %s65 = scalar_lea.vmem %s1, %s64
  %v66 = vld [vmem:[%s65] sm:$0x1]
  %67 = vst.msk [vmem:[#allocation2 + $0x7] sm:$0x1] %vm38, %v66
  %s68 = sld [smem:[#allocation5 + $0x4]]
  %s69 = scalar_lea.vmem %s1, %s68
  %v70 = vld [vmem:[%s69] sm:$0x1]
  %71 = vst.msk [vmem:[#allocation2 + $0x8] sm:$0x1] %vm38, %v70
  %s72 = sld [smem:[#allocation5 + $0x84]]
  %s73 = scalar_lea.vmem %s1, %s72
  %v74 = vld [vmem:[%s73] sm:$0x1]
  %75 = vst.msk [vmem:[#allocation2 + $0x9] sm:$0x1] %vm38, %v74
  %s76 = sld [smem:[#allocation5 + $0x5]]
  %s77 = scalar_lea.vmem %s1, %s76
  %v78 = vld [vmem:[%s77] sm:$0x1]
  %79 = vst.msk [vmem:[#allocation2 + $0xa] sm:$0x1] %vm38, %v78
  %s80 = sld [smem:[#allocation5 + $0x85]]
  %s81 = scalar_lea.vmem %s1, %s80
  %v82 = vld [vmem:[%s81] sm:$0x1]
  %83 = vst.msk [vmem:[#allocation2 + $0xb] sm:$0x1] %vm38, %v82
  %s84 = sld [smem:[#allocation5 + $0x6]]
  %s85 = scalar_lea.vmem %s1, %s84
  %v86 = vld [vmem:[%s85] sm:$0x1]
  %87 = vst.msk [vmem:[#allocation2 + $0xc] sm:$0x1] %vm38, %v86
  %s88 = sld [smem:[#allocation5 + $0x86]]
  %s89 = scalar_lea.vmem %s1, %s88
  %v90 = vld [vmem:[%s89] sm:$0x1]
  %91 = vst.msk [vmem:[#allocation2 + $0xd] sm:$0x1] %vm38, %v90
  %s92 = sld [smem:[#allocation5 + $0x7]]
  %s93 = scalar_lea.vmem %s1, %s92
  %v94 = vld [vmem:[%s93] sm:$0x1]
  %95 = vst.msk [vmem:[#allocation2 + $0xe] sm:$0x1] %vm38, %v94
  %s96 = sld [smem:[#allocation5 + $0x87]]
  %s97 = scalar_lea.vmem %s1, %s96
  %v98 = vld [vmem:[%s97] sm:$0x1]
  %99 = vst.msk [vmem:[#allocation2 + $0xf] sm:$0x1] %vm38, %v98
  %v100 = vld [vmem:[#allocation2] sm:$0xff]
  %v101 = vld [vmem:[#allocation2 + $0x8] sm:$0xff]
  %v102 = vld [vmem:[%s2] sm:$0xff]
  %v103 = vld [vmem:[%s2 + $0x8] sm:$0xff]
  %v104 = vld [vmem:[%s2 + $0x10] sm:$0xff]
  %v105 = vld [vmem:[%s2 + $0x18] sm:$0xff]
  %v106 = vld [vmem:[%s2 + $0x20] sm:$0xff]
  %v107 = vld [vmem:[%s2 + $0x28] sm:$0xff]
  %v108 = vld [vmem:[%s2 + $0x30] sm:$0xff]
  %v109 = vld [vmem:[%s2 + $0x38] sm:$0xff]
  %v110 = vld [vmem:[%s5] sm:$0x3]
  %v111 = vld [vmem:[%s3] sm:$0xff]
  %v112 = vld [vmem:[%s3 + $0x8] sm:$0xff]
  %v113 = vld [vmem:[%s3 + $0x10] sm:$0xff]
  %v114 = vld [vmem:[%s3 + $0x18] sm:$0xff]
  %v115 = vld [vmem:[%s3 + $0x20] sm:$0xff]
  %v116 = vld [vmem:[%s3 + $0x28] sm:$0xff]
  %v117 = vld [vmem:[%s3 + $0x30] sm:$0xff]
  %v118 = vld [vmem:[%s3 + $0x38] sm:$0xff]
  %v119 = vld [vmem:[%s3 + $0x40] sm:$0xff]
  %v120 = vld [vmem:[%s3 + $0x48] sm:$0xff]
  %v121 = vld [vmem:[%s3 + $0x50] sm:$0xff]
  %v122 = vld [vmem:[%s3 + $0x58] sm:$0xff]
  %v123 = vld [vmem:[%s3 + $0x60] sm:$0xff]
  %v124 = vld [vmem:[%s3 + $0x68] sm:$0xff]
  %v125 = vld [vmem:[%s3 + $0x70] sm:$0xff]
  %v126 = vld [vmem:[%s3 + $0x78] sm:$0xff]
  %v127 = vld [vmem:[%s4] sm:$0xff]
  %v128 = vld [vmem:[%s4 + $0x8] sm:$0xff]
  %v129 = vld [vmem:[%s4 + $0x10] sm:$0xff]
  %v130 = vld [vmem:[%s4 + $0x18] sm:$0xff]
  %v131 = vld [vmem:[%s4 + $0x20] sm:$0xff]
  %v132 = vld [vmem:[%s4 + $0x28] sm:$0xff]
  %v133 = vld [vmem:[%s4 + $0x30] sm:$0xff]
  %v134 = vld [vmem:[%s4 + $0x38] sm:$0xff]
  %v135 = vld [vmem:[%s4 + $0x40] sm:$0xff]
  %v136 = vld [vmem:[%s4 + $0x48] sm:$0xff]
  %v137 = vld [vmem:[%s4 + $0x50] sm:$0xff]
  %v138 = vld [vmem:[%s4 + $0x58] sm:$0xff]
  %v139 = vld [vmem:[%s4 + $0x60] sm:$0xff]
  %v140 = vld [vmem:[%s4 + $0x68] sm:$0xff]
  %v141 = vld [vmem:[%s4 + $0x70] sm:$0xff]
  %v142 = vld [vmem:[%s4 + $0x78] sm:$0xff]
  %v143 = vld [vmem:[%s6] sm:$0xff]
  %v144 = vld [vmem:[%s6 + $0x8] sm:$0xff]
  %v145 = vld [vmem:[%s6 + $0x10] sm:$0xff]
  %v146 = vld [vmem:[%s6 + $0x18] sm:$0xff]
  %v147 = vld [vmem:[%s6 + $0x20] sm:$0xff]
  %v148 = vld [vmem:[%s6 + $0x28] sm:$0xff]
  %v149 = vld [vmem:[%s6 + $0x30] sm:$0xff]
  %v150 = vld [vmem:[%s6 + $0x38] sm:$0xff]
  %v151 = vld [vmem:[%s6 + $0x40] sm:$0xff]
  %v152 = vld [vmem:[%s6 + $0x48] sm:$0xff]
  %v153 = vld [vmem:[%s6 + $0x50] sm:$0xff]
  %v154 = vld [vmem:[%s6 + $0x58] sm:$0xff]
  %v155 = vld [vmem:[%s6 + $0x60] sm:$0xff]
  %v156 = vld [vmem:[%s6 + $0x68] sm:$0xff]
  %v157 = vld [vmem:[%s6 + $0x70] sm:$0xff]
  %v158 = vld [vmem:[%s6 + $0x78] sm:$0xff]
  %v159 = vld [vmem:[%s6 + $0x80] sm:$0xff]
  %v160 = vld [vmem:[%s6 + $0x88] sm:$0xff]
  %v161 = vld [vmem:[%s6 + $0x90] sm:$0xff]
  %v162 = vld [vmem:[%s6 + $0x98] sm:$0xff]
  %v163 = vld [vmem:[%s6 + $0xa0] sm:$0xff]
  %v164 = vld [vmem:[%s6 + $0xa8] sm:$0xff]
  %v165 = vld [vmem:[%s6 + $0xb0] sm:$0xff]
  %v166 = vld [vmem:[%s6 + $0xb8] sm:$0xff]
  %v167 = vld [vmem:[%s6 + $0xc0] sm:$0xff]
  %v168 = vld [vmem:[%s6 + $0xc8] sm:$0xff]
  %v169 = vld [vmem:[%s6 + $0xd0] sm:$0xff]
  %v170 = vld [vmem:[%s6 + $0xd8] sm:$0xff]
  %v171 = vld [vmem:[%s6 + $0xe0] sm:$0xff]
  %v172 = vld [vmem:[%s6 + $0xe8] sm:$0xff]
  %v173 = vld [vmem:[%s6 + $0xf0] sm:$0xff]
  %v174 = vld [vmem:[%s6 + $0xf8] sm:$0xff]
  %v175 = vld [vmem:[%s7] sm:$0x1]
  %v177 = vperm.slane %v110, 0
  %v178 = vperm.slane %v110, 1
  %vm181 = vcmask 261120
  %v183 = vsel %vm181, %v100, 0
  %v186 = vsel %vm181, %v101, 0
  %188 = vmatpush.msra.mxu0 0.0
  %189 = vmatpush.msra.mxu0 0.0
  %190 = vmatpush.msra.mxu0 0.0
  %191 = vmatpush.msra.mxu0 0.0
  %192 = vmatpush.msra.mxu0 0.0
  %193 = vmatpush.msra.mxu0 0.0
  %194 = vmatpush.msra.mxu0 0.0
  %195 = vmatpush.msra.mxu0 0.0
  %196 = vmatpush.msra.mxu0 0.0
  %197 = vmatpush.msra.mxu0 0.0
  %198 = vmatpush.msra.mxu0 0.0
  %199 = vmatpush.msra.mxu0 0.0
  %200 = vmatpush.msra.mxu0 %v108
  %201 = vmatpush.msra.mxu0 %v106
  %202 = vmatpush.msra.mxu0 %v104
  %203 = vmatpush.msra.mxu0 %v102
  %204 = vmatmul.f32.gmra.mxu0 %v183
  %v205 = vpop.f32.mrf.mxu0
  %v206 = vadd.f32 %v177, %v205
  %207 = vmatmul.f32.gmra.mxu0 %v186
  %v208 = vpop.f32.mrf.mxu0
  %v209 = vadd.f32 %v177, %v208
  %210 = vdwg.mxu0
  %211 = vmatpush.msra.mxu0 0.0
  %212 = vmatpush.msra.mxu0 0.0
  %213 = vmatpush.msra.mxu0 0.0
  %214 = vmatpush.msra.mxu0 0.0
  %215 = vmatpush.msra.mxu0 0.0
  %216 = vmatpush.msra.mxu0 0.0
  %217 = vmatpush.msra.mxu0 0.0
  %218 = vmatpush.msra.mxu0 0.0
  %219 = vmatpush.msra.mxu0 0.0
  %220 = vmatpush.msra.mxu0 0.0
  %221 = vmatpush.msra.mxu0 0.0
  %222 = vmatpush.msra.mxu0 0.0
  %223 = vmatpush.msra.mxu0 %v109
  %224 = vmatpush.msra.mxu0 %v107
  %225 = vmatpush.msra.mxu0 %v105
  %226 = vmatpush.msra.mxu0 %v103
  %227 = vmatmul.f32.gmra.mxu0 %v183
  %v228 = vpop.f32.mrf.mxu0
  %v229 = vadd.f32 %v178, %v228
  %230 = vmatmul.f32.gmra.mxu0 %v186
  %v231 = vpop.f32.mrf.mxu0
  %v232 = vadd.f32 %v178, %v231
  %233 = vdwg.mxu0
  %234 = vmatpush.msra.mxu0 %v126
  %235 = vmatpush.msra.mxu0 %v125
  %236 = vmatpush.msra.mxu0 %v124
  %237 = vmatpush.msra.mxu0 %v123
  %238 = vmatpush.msra.mxu0 %v122
  %239 = vmatpush.msra.mxu0 %v121
  %240 = vmatpush.msra.mxu0 %v120
  %241 = vmatpush.msra.mxu0 %v119
  %242 = vmatpush.msra.mxu0 %v118
  %243 = vmatpush.msra.mxu0 %v117
  %244 = vmatpush.msra.mxu0 %v116
  %245 = vmatpush.msra.mxu0 %v115
  %246 = vmatpush.msra.mxu0 %v114
  %247 = vmatpush.msra.mxu0 %v113
  %248 = vmatpush.msra.mxu0 %v112
  %249 = vmatpush.msra.mxu0 %v111
  %250 = vmatmul.f32.gmra.mxu0 0.0
  %v251 = vpop.f32.mrf.mxu0
  %v252 = vadd.f32 0.0, %v251
  %253 = vdwg.mxu0
  %v254 = vadd.f32 %v206, %v252
  %v255 = vxor.u32 %v254, 2147483648
  %v256 = vmul.f32 %v255, 1.442695
  %v257 = vpow.pop %v256
  %v258 = vadd.f32 %v257, 1.0
  %v259 = vrcp.pop %v258
  %v260 = vmul.f32 %v258, %v259
  %v261 = vsub.f32 1.0, %v260
  %v262 = vmul.f32 %v259, %v261
  %v263 = vadd.f32 %v259, %v262
  %vm264 = vweird.f32 %v258
  %vm265 = vweird.f32 %v259
  %vm266 = vmor %vm264, %vm265
  %v267 = vsel %vm266, %v259, %v263
  %v268 = vand.u32 2147483647, %v258
  %vm269 = vcmp.eq.f32.partialorder %v268, 8.507059e+37
  %v270 = vand.u32 %v258, 2147483648
  %v271 = vor.u32 1.1754944e-38, %v270
  %v272 = vsel %vm269, %v271, %v267
  %v273 = vmul.f32 1.0, %v272
  %v274 = vtanh.pop %v254
  %275 = vrot.lane.b32.xlu0 %v273, 96
  %v276 = vpop.permute.xlu0 %275
  %v277 = vmul.f32 %v276, 0.0
  %278 = vrot.lane.b32.xlu0 %v274, 64
  %v279 = vpop.permute.xlu0 %278
  %v280 = vmul.f32 %v273, %v279
  %v281 = vadd.f32 %v277, %v280
  %282 = vrot.lane.b32.xlu0 %v273, 32
  %v283 = vpop.permute.xlu0 %282
  %v284 = vtanh.pop %v281
  %v285 = vmul.f32 %v283, %v284
  %286 = vst [vmem:[#allocation3] sm:$0x3] %v285
  %287 = vmatpush.msra.mxu0 %v126
  %288 = vmatpush.msra.mxu0 %v125
  %289 = vmatpush.msra.mxu0 %v124
  %290 = vmatpush.msra.mxu0 %v123
  %291 = vmatpush.msra.mxu0 %v122
  %292 = vmatpush.msra.mxu0 %v121
  %293 = vmatpush.msra.mxu0 %v120
  %294 = vmatpush.msra.mxu0 %v119
  %295 = vmatpush.msra.mxu0 %v118
  %296 = vmatpush.msra.mxu0 %v117
  %297 = vmatpush.msra.mxu0 %v116
  %298 = vmatpush.msra.mxu0 %v115
  %299 = vmatpush.msra.mxu0 %v114
  %300 = vmatpush.msra.mxu0 %v113
  %301 = vmatpush.msra.mxu0 %v112
  %302 = vmatpush.msra.mxu0 %v111
  %303 = vmatmul.f32.gmra.mxu0 %v285
  %v304 = vpop.f32.mrf.mxu0
  %v305 = vadd.f32 0.0, %v304
  %306 = vdwg.mxu0
  %v308 = vrot.slane %v305, 6
  %v310 = vadd.f32 %v206, %v308
  %v311 = vxor.u32 %v310, 2147483648
  %v312 = vmul.f32 %v311, 1.442695
  %v313 = vpow.pop %v312
  %v314 = vadd.f32 %v313, 1.0
  %v315 = vrcp.pop %v314
  %v316 = vmul.f32 %v314, %v315
  %v317 = vsub.f32 1.0, %v316
  %v318 = vmul.f32 %v315, %v317
  %v319 = vadd.f32 %v315, %v318
  %vm320 = vweird.f32 %v314
  %vm321 = vweird.f32 %v315
  %vm322 = vmor %vm320, %vm321
  %v323 = vsel %vm322, %v315, %v319
  %v324 = vand.u32 2147483647, %v314
  %vm325 = vcmp.eq.f32.partialorder %v324, 8.507059e+37
  %v326 = vand.u32 %v314, 2147483648
  %v327 = vor.u32 1.1754944e-38, %v326
  %v328 = vsel %vm325, %v327, %v323
  %v329 = vmul.f32 1.0, %v328
  %v330 = vtanh.pop %v310
  %v332 = vrot.slane %v329, 2
  %334 = vrot.lane.b32.xlu0 %v332, 96
  %v335 = vpop.permute.xlu0 %334
  %v336 = vmul.f32 %v335, %v281
  %v338 = vrot.slane %v330, 2
  %340 = vrot.lane.b32.xlu0 %v338, 64
  %v341 = vpop.permute.xlu0 %340
  %v343 = vrot.slane %v341, 6
  %v345 = vmul.f32 %v329, %v343
  %v347 = vrot.slane %v345, 2
  %v349 = vadd.f32 %v336, %v347
  %350 = vrot.lane.b32.xlu0 %v332, 32
  %v351 = vpop.permute.xlu0 %350
  %v352 = vtanh.pop %v349
  %v353 = vmul.f32 %v351, %v352
  %v355 = vrot.slane %v353, 6
  %357 = vst [vmem:[#allocation3] sm:$0xc] %v355
  %358 = vmatpush.msra.mxu0 %v126
  %359 = vmatpush.msra.mxu0 %v125
  %360 = vmatpush.msra.mxu0 %v124
  %361 = vmatpush.msra.mxu0 %v123
  %362 = vmatpush.msra.mxu0 %v122
  %363 = vmatpush.msra.mxu0 %v121
  %364 = vmatpush.msra.mxu0 %v120
  %365 = vmatpush.msra.mxu0 %v119
  %366 = vmatpush.msra.mxu0 %v118
  %367 = vmatpush.msra.mxu0 %v117
  %368 = vmatpush.msra.mxu0 %v116
  %369 = vmatpush.msra.mxu0 %v115
  %370 = vmatpush.msra.mxu0 %v114
  %371 = vmatpush.msra.mxu0 %v113
  %372 = vmatpush.msra.mxu0 %v112
  %373 = vmatpush.msra.mxu0 %v111
  %374 = vmatmul.f32.gmra.mxu0 %v353
  %v375 = vpop.f32.mrf.mxu0
  %v376 = vadd.f32 0.0, %v375
  %377 = vdwg.mxu0
  %v379 = vrot.slane %v376, 4
  %v381 = vadd.f32 %v206, %v379
  %v382 = vxor.u32 %v381, 2147483648
  %v383 = vmul.f32 %v382, 1.442695
  %v384 = vpow.pop %v383
  %v385 = vadd.f32 %v384, 1.0
  %v386 = vrcp.pop %v385
  %v387 = vmul.f32 %v385, %v386
  %v388 = vsub.f32 1.0, %v387
  %v389 = vmul.f32 %v386, %v388
  %v390 = vadd.f32 %v386, %v389
  %vm391 = vweird.f32 %v385
  %vm392 = vweird.f32 %v386
  %vm393 = vmor %vm391, %vm392
  %v394 = vsel %vm393, %v386, %v390
  %v395 = vand.u32 2147483647, %v385
  %vm396 = vcmp.eq.f32.partialorder %v395, 8.507059e+37
  %v397 = vand.u32 %v385, 2147483648
  %v398 = vor.u32 1.1754944e-38, %v397
  %v399 = vsel %vm396, %v398, %v394
  %v400 = vmul.f32 1.0, %v399
  %v401 = vtanh.pop %v381
  %v403 = vrot.slane %v400, 4
  %405 = vrot.lane.b32.xlu0 %v403, 96
  %v406 = vpop.permute.xlu0 %405
  %v407 = vmul.f32 %v406, %v349
  %v409 = vrot.slane %v401, 4
  %411 = vrot.lane.b32.xlu0 %v409, 64
  %v412 = vpop.permute.xlu0 %411
  %v414 = vrot.slane %v412, 4
  %v416 = vmul.f32 %v400, %v414
  %v418 = vrot.slane %v416, 4
  %v420 = vadd.f32 %v407, %v418
  %421 = vrot.lane.b32.xlu0 %v403, 32
  %v422 = vpop.permute.xlu0 %421
  %v423 = vtanh.pop %v420
  %v424 = vmul.f32 %v422, %v423
  %v426 = vrot.slane %v424, 4
  %428 = vst [vmem:[#allocation3] sm:$0x30] %v426
  %429 = vmatpush.msra.mxu0 %v126
  %430 = vmatpush.msra.mxu0 %v125
  %431 = vmatpush.msra.mxu0 %v124
  %432 = vmatpush.msra.mxu0 %v123
  %433 = vmatpush.msra.mxu0 %v122
  %434 = vmatpush.msra.mxu0 %v121
  %435 = vmatpush.msra.mxu0 %v120
  %436 = vmatpush.msra.mxu0 %v119
  %437 = vmatpush.msra.mxu0 %v118
  %438 = vmatpush.msra.mxu0 %v117
  %439 = vmatpush.msra.mxu0 %v116
  %440 = vmatpush.msra.mxu0 %v115
  %441 = vmatpush.msra.mxu0 %v114
  %442 = vmatpush.msra.mxu0 %v113
  %443 = vmatpush.msra.mxu0 %v112
  %444 = vmatpush.msra.mxu0 %v111
  %445 = vmatmul.f32.gmra.mxu0 %v424
  %v446 = vpop.f32.mrf.mxu0
  %v447 = vadd.f32 0.0, %v446
  %448 = vdwg.mxu0
  %v450 = vrot.slane %v447, 2
  %v452 = vadd.f32 %v206, %v450
  %v453 = vxor.u32 %v452, 2147483648
  %v454 = vmul.f32 %v453, 1.442695
  %v455 = vpow.pop %v454
  %v456 = vadd.f32 %v455, 1.0
  %v457 = vrcp.pop %v456
  %v458 = vmul.f32 %v456, %v457
  %v459 = vsub.f32 1.0, %v458
  %v460 = vmul.f32 %v457, %v459
  %v461 = vadd.f32 %v457, %v460
  %vm462 = vweird.f32 %v456
  %vm463 = vweird.f32 %v457
  %vm464 = vmor %vm462, %vm463
  %v465 = vsel %vm464, %v457, %v461
  %v466 = vand.u32 2147483647, %v456
  %vm467 = vcmp.eq.f32.partialorder %v466, 8.507059e+37
  %v468 = vand.u32 %v456, 2147483648
  %v469 = vor.u32 1.1754944e-38, %v468
  %v470 = vsel %vm467, %v469, %v465
  %v471 = vmul.f32 1.0, %v470
  %v472 = vtanh.pop %v452
  %v474 = vrot.slane %v471, 6
  %476 = vrot.lane.b32.xlu0 %v474, 96
  %v477 = vpop.permute.xlu0 %476
  %v478 = vmul.f32 %v477, %v420
  %v480 = vrot.slane %v472, 6
  %482 = vrot.lane.b32.xlu0 %v480, 64
  %v483 = vpop.permute.xlu0 %482
  %v485 = vrot.slane %v483, 2
  %v487 = vmul.f32 %v471, %v485
  %v489 = vrot.slane %v487, 6
  %v491 = vadd.f32 %v478, %v489
  %492 = vrot.lane.b32.xlu0 %v474, 32
  %v493 = vpop.permute.xlu0 %492
  %v494 = vtanh.pop %v491
  %v495 = vmul.f32 %v493, %v494
  %v497 = vrot.slane %v495, 2
  %499 = vst [vmem:[#allocation3] sm:$0xc0] %v497
  %500 = vmatpush.msra.mxu0 %v126
  %501 = vmatpush.msra.mxu0 %v125
  %502 = vmatpush.msra.mxu0 %v124
  %503 = vmatpush.msra.mxu0 %v123
  %504 = vmatpush.msra.mxu0 %v122
  %505 = vmatpush.msra.mxu0 %v121
  %506 = vmatpush.msra.mxu0 %v120
  %507 = vmatpush.msra.mxu0 %v119
  %508 = vmatpush.msra.mxu0 %v118
  %509 = vmatpush.msra.mxu0 %v117
  %510 = vmatpush.msra.mxu0 %v116
  %511 = vmatpush.msra.mxu0 %v115
  %512 = vmatpush.msra.mxu0 %v114
  %513 = vmatpush.msra.mxu0 %v113
  %514 = vmatpush.msra.mxu0 %v112
  %515 = vmatpush.msra.mxu0 %v111
  %516 = vmatmul.f32.gmra.mxu0 %v495
  %v517 = vpop.f32.mrf.mxu0
  %v518 = vadd.f32 0.0, %v517
  %519 = vdwg.mxu0
  %v520 = vadd.f32 %v209, %v518
  %v521 = vxor.u32 %v520, 2147483648
  %v522 = vmul.f32 %v521, 1.442695
  %v523 = vpow.pop %v522
  %v524 = vadd.f32 %v523, 1.0
  %v525 = vrcp.pop %v524
  %v526 = vmul.f32 %v524, %v525
  %v527 = vsub.f32 1.0, %v526
  %v528 = vmul.f32 %v525, %v527
  %v529 = vadd.f32 %v525, %v528
  %vm530 = vweird.f32 %v524
  %vm531 = vweird.f32 %v525
  %vm532 = vmor %vm530, %vm531
  %v533 = vsel %vm532, %v525, %v529
  %v534 = vand.u32 2147483647, %v524
  %vm535 = vcmp.eq.f32.partialorder %v534, 8.507059e+37
  %v536 = vand.u32 %v524, 2147483648
  %v537 = vor.u32 1.1754944e-38, %v536
  %v538 = vsel %vm535, %v537, %v533
  %v539 = vmul.f32 1.0, %v538
  %v540 = vtanh.pop %v520
  %541 = vrot.lane.b32.xlu0 %v539, 96
  %v542 = vpop.permute.xlu0 %541
  %v543 = vmul.f32 %v542, %v491
  %544 = vrot.lane.b32.xlu0 %v540, 64
  %v545 = vpop.permute.xlu0 %544
  %v546 = vmul.f32 %v539, %v545
  %v547 = vadd.f32 %v543, %v546
  %548 = vrot.lane.b32.xlu0 %v539, 32
  %v549 = vpop.permute.xlu0 %548
  %v550 = vtanh.pop %v547
  %v551 = vmul.f32 %v549, %v550
  %552 = vst [vmem:[#allocation3 + $0x10] sm:$0x3] %v551
  %553 = vmatpush.msra.mxu0 %v126
  %554 = vmatpush.msra.mxu0 %v125
  %555 = vmatpush.msra.mxu0 %v124
  %556 = vmatpush.msra.mxu0 %v123
  %557 = vmatpush.msra.mxu0 %v122
  %558 = vmatpush.msra.mxu0 %v121
  %559 = vmatpush.msra.mxu0 %v120
  %560 = vmatpush.msra.mxu0 %v119
  %561 = vmatpush.msra.mxu0 %v118
  %562 = vmatpush.msra.mxu0 %v117
  %563 = vmatpush.msra.mxu0 %v116
  %564 = vmatpush.msra.mxu0 %v115
  %565 = vmatpush.msra.mxu0 %v114
  %566 = vmatpush.msra.mxu0 %v113
  %567 = vmatpush.msra.mxu0 %v112
  %568 = vmatpush.msra.mxu0 %v111
  %569 = vmatmul.f32.gmra.mxu0 %v551
  %v570 = vpop.f32.mrf.mxu0
  %v571 = vadd.f32 0.0, %v570
  %572 = vdwg.mxu0
  %v574 = vrot.slane %v571, 6
  %v576 = vadd.f32 %v209, %v574
  %v577 = vxor.u32 %v576, 2147483648
  %v578 = vmul.f32 %v577, 1.442695
  %v579 = vpow.pop %v578
  %v580 = vadd.f32 %v579, 1.0
  %v581 = vrcp.pop %v580
  %v582 = vmul.f32 %v580, %v581
  %v583 = vsub.f32 1.0, %v582
  %v584 = vmul.f32 %v581, %v583
  %v585 = vadd.f32 %v581, %v584
  %vm586 = vweird.f32 %v580
  %vm587 = vweird.f32 %v581
  %vm588 = vmor %vm586, %vm587
  %v589 = vsel %vm588, %v581, %v585
  %v590 = vand.u32 2147483647, %v580
  %vm591 = vcmp.eq.f32.partialorder %v590, 8.507059e+37
  %v592 = vand.u32 %v580, 2147483648
  %v593 = vor.u32 1.1754944e-38, %v592
  %v594 = vsel %vm591, %v593, %v589
  %v595 = vmul.f32 1.0, %v594
  %v596 = vtanh.pop %v576
  %v598 = vrot.slane %v595, 2
  %600 = vrot.lane.b32.xlu0 %v598, 96
  %v601 = vpop.permute.xlu0 %600
  %v602 = vmul.f32 %v601, %v547
  %v604 = vrot.slane %v596, 2
  %606 = vrot.lane.b32.xlu0 %v604, 64
  %v607 = vpop.permute.xlu0 %606
  %v609 = vrot.slane %v607, 6
  %v611 = vmul.f32 %v595, %v609
  %v613 = vrot.slane %v611, 2
  %v615 = vadd.f32 %v602, %v613
  %616 = vrot.lane.b32.xlu0 %v598, 32
  %v617 = vpop.permute.xlu0 %616
  %v618 = vtanh.pop %v615
  %v619 = vmul.f32 %v617, %v618
  %v621 = vrot.slane %v619, 6
  %623 = vst [vmem:[#allocation3 + $0x10] sm:$0xc] %v621
  %624 = vmatpush.msra.mxu0 %v126
  %625 = vmatpush.msra.mxu0 %v125
  %626 = vmatpush.msra.mxu0 %v124
  %627 = vmatpush.msra.mxu0 %v123
  %628 = vmatpush.msra.mxu0 %v122
  %629 = vmatpush.msra.mxu0 %v121
  %630 = vmatpush.msra.mxu0 %v120
  %631 = vmatpush.msra.mxu0 %v119
  %632 = vmatpush.msra.mxu0 %v118
  %633 = vmatpush.msra.mxu0 %v117
  %634 = vmatpush.msra.mxu0 %v116
  %635 = vmatpush.msra.mxu0 %v115
  %636 = vmatpush.msra.mxu0 %v114
  %637 = vmatpush.msra.mxu0 %v113
  %638 = vmatpush.msra.mxu0 %v112
  %639 = vmatpush.msra.mxu0 %v111
  %640 = vmatmul.f32.gmra.mxu0 %v619
  %v641 = vpop.f32.mrf.mxu0
  %v642 = vadd.f32 0.0, %v641
  %643 = vdwg.mxu0
  %v645 = vrot.slane %v642, 4
  %v647 = vadd.f32 %v209, %v645
  %v648 = vxor.u32 %v647, 2147483648
  %v649 = vmul.f32 %v648, 1.442695
  %v650 = vpow.pop %v649
  %v651 = vadd.f32 %v650, 1.0
  %v652 = vrcp.pop %v651
  %v653 = vmul.f32 %v651, %v652
  %v654 = vsub.f32 1.0, %v653
  %v655 = vmul.f32 %v652, %v654
  %v656 = vadd.f32 %v652, %v655
  %vm657 = vweird.f32 %v651
  %vm658 = vweird.f32 %v652
  %vm659 = vmor %vm657, %vm658
  %v660 = vsel %vm659, %v652, %v656
  %v661 = vand.u32 2147483647, %v651
  %vm662 = vcmp.eq.f32.partialorder %v661, 8.507059e+37
  %v663 = vand.u32 %v651, 2147483648
  %v664 = vor.u32 1.1754944e-38, %v663
  %v665 = vsel %vm662, %v664, %v660
  %v666 = vmul.f32 1.0, %v665
  %v667 = vtanh.pop %v647
  %v669 = vrot.slane %v666, 4
  %671 = vrot.lane.b32.xlu0 %v669, 96
  %v672 = vpop.permute.xlu0 %671
  %v673 = vmul.f32 %v672, %v615
  %v675 = vrot.slane %v667, 4
  %677 = vrot.lane.b32.xlu0 %v675, 64
  %v678 = vpop.permute.xlu0 %677
  %v680 = vrot.slane %v678, 4
  %v682 = vmul.f32 %v666, %v680
  %v684 = vrot.slane %v682, 4
  %v686 = vadd.f32 %v673, %v684
  %687 = vrot.lane.b32.xlu0 %v669, 32
  %v688 = vpop.permute.xlu0 %687
  %v689 = vtanh.pop %v686
  %v690 = vmul.f32 %v688, %v689
  %v692 = vrot.slane %v690, 4
  %694 = vst [vmem:[#allocation3 + $0x10] sm:$0x30] %v692
  %695 = vmatpush.msra.mxu0 %v126
  %696 = vmatpush.msra.mxu0 %v125
  %697 = vmatpush.msra.mxu0 %v124
  %698 = vmatpush.msra.mxu0 %v123
  %699 = vmatpush.msra.mxu0 %v122
  %700 = vmatpush.msra.mxu0 %v121
  %701 = vmatpush.msra.mxu0 %v120
  %702 = vmatpush.msra.mxu0 %v119
  %703 = vmatpush.msra.mxu0 %v118
  %704 = vmatpush.msra.mxu0 %v117
  %705 = vmatpush.msra.mxu0 %v116
  %706 = vmatpush.msra.mxu0 %v115
  %707 = vmatpush.msra.mxu0 %v114
  %708 = vmatpush.msra.mxu0 %v113
  %709 = vmatpush.msra.mxu0 %v112
  %710 = vmatpush.msra.mxu0 %v111
  %711 = vmatmul.f32.gmra.mxu0 %v690
  %v712 = vpop.f32.mrf.mxu0
  %v713 = vadd.f32 0.0, %v712
  %714 = vdwg.mxu0
  %v716 = vrot.slane %v713, 2
  %v718 = vadd.f32 %v209, %v716
  %v719 = vxor.u32 %v718, 2147483648
  %v720 = vmul.f32 %v719, 1.442695
  %v721 = vpow.pop %v720
  %v722 = vadd.f32 %v721, 1.0
  %v723 = vrcp.pop %v722
  %v724 = vmul.f32 %v722, %v723
  %v725 = vsub.f32 1.0, %v724
  %v726 = vmul.f32 %v723, %v725
  %v727 = vadd.f32 %v723, %v726
  %vm728 = vweird.f32 %v722
  %vm729 = vweird.f32 %v723
  %vm730 = vmor %vm728, %vm729
  %v731 = vsel %vm730, %v723, %v727
  %v732 = vand.u32 2147483647, %v722
  %vm733 = vcmp.eq.f32.partialorder %v732, 8.507059e+37
  %v734 = vand.u32 %v722, 2147483648
  %v735 = vor.u32 1.1754944e-38, %v734
  %v736 = vsel %vm733, %v735, %v731
  %v737 = vmul.f32 1.0, %v736
  %v738 = vtanh.pop %v718
  %v740 = vrot.slane %v737, 6
  %742 = vrot.lane.b32.xlu0 %v740, 96
  %v743 = vpop.permute.xlu0 %742
  %v744 = vmul.f32 %v743, %v686
  %v746 = vrot.slane %v738, 6
  %748 = vrot.lane.b32.xlu0 %v746, 64
  %v749 = vpop.permute.xlu0 %748
  %v751 = vrot.slane %v749, 2
  %v753 = vmul.f32 %v737, %v751
  %v755 = vrot.slane %v753, 6
  %v757 = vadd.f32 %v744, %v755
  %758 = vrot.lane.b32.xlu0 %v740, 32
  %v759 = vpop.permute.xlu0 %758
  %v760 = vtanh.pop %v757
  %v761 = vmul.f32 %v759, %v760
  %v763 = vrot.slane %v761, 2
  %765 = vst [vmem:[#allocation3 + $0x10] sm:$0xc0] %v763
  %766 = vmatpush.msra.mxu0 %v142
  %767 = vmatpush.msra.mxu0 %v141
  %768 = vmatpush.msra.mxu0 %v140
  %769 = vmatpush.msra.mxu0 %v139
  %770 = vmatpush.msra.mxu0 %v138
  %771 = vmatpush.msra.mxu0 %v137
  %772 = vmatpush.msra.mxu0 %v136
  %773 = vmatpush.msra.mxu0 %v135
  %774 = vmatpush.msra.mxu0 %v134
  %775 = vmatpush.msra.mxu0 %v133
  %776 = vmatpush.msra.mxu0 %v132
  %777 = vmatpush.msra.mxu0 %v131
  %778 = vmatpush.msra.mxu0 %v130
  %779 = vmatpush.msra.mxu0 %v129
  %780 = vmatpush.msra.mxu0 %v128
  %781 = vmatpush.msra.mxu0 %v127
  %782 = vmatmul.f32.gmra.mxu0 %v761
  %v783 = vpop.f32.mrf.mxu0
  %v784 = vadd.f32 0.0, %v783
  %785 = vdwg.mxu0
  %v787 = vrot.slane %v784, 2
  %v789 = vadd.f32 %v232, %v787
  %v790 = vxor.u32 %v789, 2147483648
  %v791 = vmul.f32 %v790, 1.442695
  %v792 = vpow.pop %v791
  %v793 = vadd.f32 %v792, 1.0
  %v794 = vrcp.pop %v793
  %v795 = vmul.f32 %v793, %v794
  %v796 = vsub.f32 1.0, %v795
  %v797 = vmul.f32 %v794, %v796
  %v798 = vadd.f32 %v794, %v797
  %vm799 = vweird.f32 %v793
  %vm800 = vweird.f32 %v794
  %vm801 = vmor %vm799, %vm800
  %v802 = vsel %vm801, %v794, %v798
  %v803 = vand.u32 2147483647, %v793
  %vm804 = vcmp.eq.f32.partialorder %v803, 8.507059e+37
  %v805 = vand.u32 %v793, 2147483648
  %v806 = vor.u32 1.1754944e-38, %v805
  %v807 = vsel %vm804, %v806, %v802
  %v808 = vmul.f32 1.0, %v807
  %v809 = vtanh.pop %v789
  %v811 = vrot.slane %v808, 6
  %813 = vrot.lane.b32.xlu0 %v811, 96
  %v814 = vpop.permute.xlu0 %813
  %v815 = vmul.f32 %v814, 0.0
  %v817 = vrot.slane %v809, 6
  %819 = vrot.lane.b32.xlu0 %v817, 64
  %v820 = vpop.permute.xlu0 %819
  %v822 = vrot.slane %v820, 2
  %v824 = vmul.f32 %v808, %v822
  %v826 = vrot.slane %v824, 6
  %v828 = vadd.f32 %v815, %v826
  %829 = vrot.lane.b32.xlu0 %v811, 32
  %v830 = vpop.permute.xlu0 %829
  %v831 = vtanh.pop %v828
  %v832 = vmul.f32 %v830, %v831
  %v834 = vrot.slane %v832, 2
  %836 = vst [vmem:[#allocation3 + $0x18] sm:$0xc0] %v834
  %v837 = vrot.slane %v784, 4
  %v839 = vadd.f32 %v232, %v837
  %v840 = vxor.u32 %v839, 2147483648
  %v841 = vmul.f32 %v840, 1.442695
  %v842 = vpow.pop %v841
  %v843 = vadd.f32 %v842, 1.0
  %v844 = vrcp.pop %v843
  %v845 = vmul.f32 %v843, %v844
  %v846 = vsub.f32 1.0, %v845
  %v847 = vmul.f32 %v844, %v846
  %v848 = vadd.f32 %v844, %v847
  %vm849 = vweird.f32 %v843
  %vm850 = vweird.f32 %v844
  %vm851 = vmor %vm849, %vm850
  %v852 = vsel %vm851, %v844, %v848
  %v853 = vand.u32 2147483647, %v843
  %vm854 = vcmp.eq.f32.partialorder %v853, 8.507059e+37
  %v855 = vand.u32 %v843, 2147483648
  %v856 = vor.u32 1.1754944e-38, %v855
  %v857 = vsel %vm854, %v856, %v852
  %v858 = vmul.f32 1.0, %v857
  %v859 = vtanh.pop %v839
  %v861 = vrot.slane %v858, 4
  %863 = vrot.lane.b32.xlu0 %v861, 96
  %v864 = vpop.permute.xlu0 %863
  %v865 = vmul.f32 %v864, %v828
  %v867 = vrot.slane %v859, 4
  %869 = vrot.lane.b32.xlu0 %v867, 64
  %v870 = vpop.permute.xlu0 %869
  %v872 = vrot.slane %v870, 4
  %v874 = vmul.f32 %v858, %v872
  %v876 = vrot.slane %v874, 4
  %v878 = vadd.f32 %v865, %v876
  %879 = vrot.lane.b32.xlu0 %v861, 32
  %v880 = vpop.permute.xlu0 %879
  %v881 = vtanh.pop %v878
  %v882 = vmul.f32 %v880, %v881
  %v884 = vrot.slane %v882, 4
  %886 = vst [vmem:[#allocation3 + $0x18] sm:$0x30] %v884
  %v887 = vrot.slane %v784, 6
  %v889 = vadd.f32 %v232, %v887
  %v890 = vxor.u32 %v889, 2147483648
  %v891 = vmul.f32 %v890, 1.442695
  %v892 = vpow.pop %v891
  %v893 = vadd.f32 %v892, 1.0
  %v894 = vrcp.pop %v893
  %v895 = vmul.f32 %v893, %v894
  %v896 = vsub.f32 1.0, %v895
  %v897 = vmul.f32 %v894, %v896
  %v898 = vadd.f32 %v894, %v897
  %vm899 = vweird.f32 %v893
  %vm900 = vweird.f32 %v894
  %vm901 = vmor %vm899, %vm900
  %v902 = vsel %vm901, %v894, %v898
  %v903 = vand.u32 2147483647, %v893
  %vm904 = vcmp.eq.f32.partialorder %v903, 8.507059e+37
  %v905 = vand.u32 %v893, 2147483648
  %v906 = vor.u32 1.1754944e-38, %v905
  %v907 = vsel %vm904, %v906, %v902
  %v908 = vmul.f32 1.0, %v907
  %v909 = vtanh.pop %v889
  %v911 = vrot.slane %v908, 2
  %913 = vrot.lane.b32.xlu0 %v911, 96
  %v914 = vpop.permute.xlu0 %913
  %v915 = vmul.f32 %v914, %v878
  %v917 = vrot.slane %v909, 2
  %919 = vrot.lane.b32.xlu0 %v917, 64
  %v920 = vpop.permute.xlu0 %919
  %v922 = vrot.slane %v920, 6
  %v924 = vmul.f32 %v908, %v922
  %v926 = vrot.slane %v924, 2
  %v928 = vadd.f32 %v915, %v926
  %929 = vrot.lane.b32.xlu0 %v911, 32
  %v930 = vpop.permute.xlu0 %929
  %v931 = vtanh.pop %v928
  %v932 = vmul.f32 %v930, %v931
  %v934 = vrot.slane %v932, 6
  %936 = vst [vmem:[#allocation3 + $0x18] sm:$0xc] %v934
  %v937 = vadd.f32 %v232, %v784
  %v938 = vxor.u32 %v937, 2147483648
  %v939 = vmul.f32 %v938, 1.442695
  %v940 = vpow.pop %v939
  %v941 = vadd.f32 %v940, 1.0
  %v942 = vrcp.pop %v941
  %v943 = vmul.f32 %v941, %v942
  %v944 = vsub.f32 1.0, %v943
  %v945 = vmul.f32 %v942, %v944
  %v946 = vadd.f32 %v942, %v945
  %vm947 = vweird.f32 %v941
  %vm948 = vweird.f32 %v942
  %vm949 = vmor %vm947, %vm948
  %v950 = vsel %vm949, %v942, %v946
  %v951 = vand.u32 2147483647, %v941
  %vm952 = vcmp.eq.f32.partialorder %v951, 8.507059e+37
  %v953 = vand.u32 %v941, 2147483648
  %v954 = vor.u32 1.1754944e-38, %v953
  %v955 = vsel %vm952, %v954, %v950
  %v956 = vmul.f32 1.0, %v955
  %v957 = vtanh.pop %v937
  %958 = vrot.lane.b32.xlu0 %v956, 96
  %v959 = vpop.permute.xlu0 %958
  %v960 = vmul.f32 %v959, %v928
  %961 = vrot.lane.b32.xlu0 %v957, 64
  %v962 = vpop.permute.xlu0 %961
  %v963 = vmul.f32 %v956, %v962
  %v964 = vadd.f32 %v960, %v963
  %965 = vrot.lane.b32.xlu0 %v956, 32
  %v966 = vpop.permute.xlu0 %965
  %v967 = vtanh.pop %v964
  %v968 = vmul.f32 %v966, %v967
  %969 = vst [vmem:[#allocation3 + $0x18] sm:$0x3] %v968
  %v970 = vadd.f32 %v229, %v787
  %v971 = vxor.u32 %v970, 2147483648
  %v972 = vmul.f32 %v971, 1.442695
  %v973 = vpow.pop %v972
  %v974 = vadd.f32 %v973, 1.0
  %v975 = vrcp.pop %v974
  %v976 = vmul.f32 %v974, %v975
  %v977 = vsub.f32 1.0, %v976
  %v978 = vmul.f32 %v975, %v977
  %v979 = vadd.f32 %v975, %v978
  %vm980 = vweird.f32 %v974
  %vm981 = vweird.f32 %v975
  %vm982 = vmor %vm980, %vm981
  %v983 = vsel %vm982, %v975, %v979
  %v984 = vand.u32 2147483647, %v974
  %vm985 = vcmp.eq.f32.partialorder %v984, 8.507059e+37
  %v986 = vand.u32 %v974, 2147483648
  %v987 = vor.u32 1.1754944e-38, %v986
  %v988 = vsel %vm985, %v987, %v983
  %v989 = vmul.f32 1.0, %v988
  %v990 = vtanh.pop %v970
  %v992 = vrot.slane %v989, 6
  %994 = vrot.lane.b32.xlu0 %v992, 96
  %v995 = vpop.permute.xlu0 %994
  %v996 = vmul.f32 %v995, %v964
  %v998 = vrot.slane %v990, 6
  %1000 = vrot.lane.b32.xlu0 %v998, 64
  %v1001 = vpop.permute.xlu0 %1000
  %v1003 = vrot.slane %v1001, 2
  %v1005 = vmul.f32 %v989, %v1003
  %v1007 = vrot.slane %v1005, 6
  %v1009 = vadd.f32 %v996, %v1007
  %1010 = vrot.lane.b32.xlu0 %v992, 32
  %v1011 = vpop.permute.xlu0 %1010
  %v1012 = vtanh.pop %v1009
  %v1013 = vmul.f32 %v1011, %v1012
  %v1015 = vrot.slane %v1013, 2
  %1017 = vst [vmem:[#allocation3 + $0x8] sm:$0xc0] %v1015
  %v1018 = vadd.f32 %v229, %v837
  %v1019 = vxor.u32 %v1018, 2147483648
  %v1020 = vmul.f32 %v1019, 1.442695
  %v1021 = vpow.pop %v1020
  %v1022 = vadd.f32 %v1021, 1.0
  %v1023 = vrcp.pop %v1022
  %v1024 = vmul.f32 %v1022, %v1023
  %v1025 = vsub.f32 1.0, %v1024
  %v1026 = vmul.f32 %v1023, %v1025
  %v1027 = vadd.f32 %v1023, %v1026
  %vm1028 = vweird.f32 %v1022
  %vm1029 = vweird.f32 %v1023
  %vm1030 = vmor %vm1028, %vm1029
  %v1031 = vsel %vm1030, %v1023, %v1027
  %v1032 = vand.u32 2147483647, %v1022
  %vm1033 = vcmp.eq.f32.partialorder %v1032, 8.507059e+37
  %v1034 = vand.u32 %v1022, 2147483648
  %v1035 = vor.u32 1.1754944e-38, %v1034
  %v1036 = vsel %vm1033, %v1035, %v1031
  %v1037 = vmul.f32 1.0, %v1036
  %v1038 = vtanh.pop %v1018
  %v1040 = vrot.slane %v1037, 4
  %1042 = vrot.lane.b32.xlu0 %v1040, 96
  %v1043 = vpop.permute.xlu0 %1042
  %v1044 = vmul.f32 %v1043, %v1009
  %v1046 = vrot.slane %v1038, 4
  %1048 = vrot.lane.b32.xlu0 %v1046, 64
  %v1049 = vpop.permute.xlu0 %1048
  %v1051 = vrot.slane %v1049, 4
  %v1053 = vmul.f32 %v1037, %v1051
  %v1055 = vrot.slane %v1053, 4
  %v1057 = vadd.f32 %v1044, %v1055
  %1058 = vrot.lane.b32.xlu0 %v1040, 32
  %v1059 = vpop.permute.xlu0 %1058
  %v1060 = vtanh.pop %v1057
  %v1061 = vmul.f32 %v1059, %v1060
  %v1063 = vrot.slane %v1061, 4
  %1065 = vst [vmem:[#allocation3 + $0x8] sm:$0x30] %v1063
  %v1066 = vadd.f32 %v229, %v887
  %v1067 = vxor.u32 %v1066, 2147483648
  %v1068 = vmul.f32 %v1067, 1.442695
  %v1069 = vpow.pop %v1068
  %v1070 = vadd.f32 %v1069, 1.0
  %v1071 = vrcp.pop %v1070
  %v1072 = vmul.f32 %v1070, %v1071
  %v1073 = vsub.f32 1.0, %v1072
  %v1074 = vmul.f32 %v1071, %v1073
  %v1075 = vadd.f32 %v1071, %v1074
  %vm1076 = vweird.f32 %v1070
  %vm1077 = vweird.f32 %v1071
  %vm1078 = vmor %vm1076, %vm1077
  %v1079 = vsel %vm1078, %v1071, %v1075
  %v1080 = vand.u32 2147483647, %v1070
  %vm1081 = vcmp.eq.f32.partialorder %v1080, 8.507059e+37
  %v1082 = vand.u32 %v1070, 2147483648
  %v1083 = vor.u32 1.1754944e-38, %v1082
  %v1084 = vsel %vm1081, %v1083, %v1079
  %v1085 = vmul.f32 1.0, %v1084
  %v1086 = vtanh.pop %v1066
  %v1088 = vrot.slane %v1085, 2
  %1090 = vrot.lane.b32.xlu0 %v1088, 96
  %v1091 = vpop.permute.xlu0 %1090
  %v1092 = vmul.f32 %v1091, %v1057
  %v1094 = vrot.slane %v1086, 2
  %1096 = vrot.lane.b32.xlu0 %v1094, 64
  %v1097 = vpop.permute.xlu0 %1096
  %v1099 = vrot.slane %v1097, 6
  %v1101 = vmul.f32 %v1085, %v1099
  %v1103 = vrot.slane %v1101, 2
  %v1105 = vadd.f32 %v1092, %v1103
  %1106 = vrot.lane.b32.xlu0 %v1088, 32
  %v1107 = vpop.permute.xlu0 %1106
  %v1108 = vtanh.pop %v1105
  %v1109 = vmul.f32 %v1107, %v1108
  %v1111 = vrot.slane %v1109, 6
  %1113 = vst [vmem:[#allocation3 + $0x8] sm:$0xc] %v1111
  %v1114 = vadd.f32 %v229, %v784
  %v1115 = vxor.u32 %v1114, 2147483648
  %v1116 = vmul.f32 %v1115, 1.442695
  %v1117 = vpow.pop %v1116
  %v1118 = vadd.f32 %v1117, 1.0
  %v1119 = vrcp.pop %v1118
  %v1120 = vmul.f32 %v1118, %v1119
  %v1121 = vsub.f32 1.0, %v1120
  %v1122 = vmul.f32 %v1119, %v1121
  %v1123 = vadd.f32 %v1119, %v1122
  %vm1124 = vweird.f32 %v1118
  %vm1125 = vweird.f32 %v1119
  %vm1126 = vmor %vm1124, %vm1125
  %v1127 = vsel %vm1126, %v1119, %v1123
  %v1128 = vand.u32 2147483647, %v1118
  %vm1129 = vcmp.eq.f32.partialorder %v1128, 8.507059e+37
  %v1130 = vand.u32 %v1118, 2147483648
  %v1131 = vor.u32 1.1754944e-38, %v1130
  %v1132 = vsel %vm1129, %v1131, %v1127
  %v1133 = vmul.f32 1.0, %v1132
  %v1134 = vtanh.pop %v1114
  %1135 = vrot.lane.b32.xlu0 %v1133, 96
  %v1136 = vpop.permute.xlu0 %1135
  %v1137 = vmul.f32 %v1136, %v1105
  %1138 = vrot.lane.b32.xlu0 %v1134, 64
  %v1139 = vpop.permute.xlu0 %1138
  %v1140 = vmul.f32 %v1133, %v1139
  %v1141 = vadd.f32 %v1137, %v1140
  %1142 = vrot.lane.b32.xlu0 %v1133, 32
  %v1143 = vpop.permute.xlu0 %1142
  %v1144 = vtanh.pop %v1141
  %v1145 = vmul.f32 %v1143, %v1144
  %1146 = vst [vmem:[#allocation3 + $0x8] sm:$0x3] %v1145
  %v1147 = vld [vmem:[#allocation3] sm:$0xff]
  %v1148 = vld [vmem:[#allocation3 + $0x8] sm:$0xff]
  %v1149 = vld [vmem:[#allocation3 + $0x10] sm:$0xff]
  %v1150 = vld [vmem:[#allocation3 + $0x18] sm:$0xff]
  %v1152 = vperm.slane %v175, 0
  %1154 = vmatpush.msra.mxu0 %v158
  %1155 = vmatpush.msra.mxu0 %v157
  %1156 = vmatpush.msra.mxu0 %v156
  %1157 = vmatpush.msra.mxu0 %v155
  %1158 = vmatpush.msra.mxu0 %v154
  %1159 = vmatpush.msra.mxu0 %v153
  %1160 = vmatpush.msra.mxu0 %v152
  %1161 = vmatpush.msra.mxu0 %v151
  %1162 = vmatpush.msra.mxu0 %v150
  %1163 = vmatpush.msra.mxu0 %v149
  %1164 = vmatpush.msra.mxu0 %v148
  %1165 = vmatpush.msra.mxu0 %v147
  %1166 = vmatpush.msra.mxu0 %v146
  %1167 = vmatpush.msra.mxu0 %v145
  %1168 = vmatpush.msra.mxu0 %v144
  %1169 = vmatpush.msra.mxu0 %v143
  %1170 = vmatmul.f32.gmra.mxu0 %v1147
  %v1171 = vpop.f32.mrf.mxu0
  %v1172 = vadd.f32 %v1152, %v1171
  %1173 = vmatmul.f32.gmra.mxu0 %v1149
  %v1174 = vpop.f32.mrf.mxu0
  %v1175 = vadd.f32 %v1152, %v1174
  %1176 = vdwg.mxu0
  %1177 = vmatpush.msra.mxu0 %v174
  %1178 = vmatpush.msra.mxu0 %v173
  %1179 = vmatpush.msra.mxu0 %v172
  %1180 = vmatpush.msra.mxu0 %v171
  %1181 = vmatpush.msra.mxu0 %v170
  %1182 = vmatpush.msra.mxu0 %v169
  %1183 = vmatpush.msra.mxu0 %v168
  %1184 = vmatpush.msra.mxu0 %v167
  %1185 = vmatpush.msra.mxu0 %v166
  %1186 = vmatpush.msra.mxu0 %v165
  %1187 = vmatpush.msra.mxu0 %v164
  %1188 = vmatpush.msra.mxu0 %v163
  %1189 = vmatpush.msra.mxu0 %v162
  %1190 = vmatpush.msra.mxu0 %v161
  %1191 = vmatpush.msra.mxu0 %v160
  %1192 = vmatpush.msra.mxu0 %v159
  %1193 = vmatmul.f32.gmra.mxu0 %v1148
  %v1194 = vpop.f32.mrf.mxu0
  %v1195 = vadd.f32 %v1172, %v1194
  %1196 = vmatmul.f32.gmra.mxu0 %v1150
  %v1197 = vpop.f32.mrf.mxu0
  %v1198 = vadd.f32 %v1175, %v1197
  %1199 = vdwg.mxu0
  %vm1200 = vcmask 64512
  %1201 = vst.msk [vmem:[%s8] sm:$0xff] %vm1200, %v1195
  %1202 = vst.msk [vmem:[%s8 + $0x8] sm:$0xff] %vm1200, %v1198
  // Predicated region
  $region30: #{tpu_custom_call.1} parent=0 // pred_check
    _
  $region31: #{tpu_custom_call.1} parent=0 // pred_check_branch
    %1204 = sbr.rel (0) target = $region33
  $region32: #{tpu_custom_call.1} parent=0 // pred_region
    _
  $region33: #{tpu_custom_call.1} parent=0 // pred_fallthru
    _
  // Predicated region
  $region34: #{tpu_custom_call.1} parent=0 // pred_check
    _
  $region35: #{tpu_custom_call.1} parent=0 // pred_check_branch
    %1206 = sbr.rel (0) target = $region37
  $region36: #{tpu_custom_call.1} parent=0 // pred_region
    _
  $region37: #{tpu_custom_call.1} parent=0 // pred_fallthru
    _

</llo_original>
